<compile_context>
chip_gen: v7x
topology: tpu7x:2x2x1
jax: 0.10.0
libtpu: 0.0.40
codegen_flags: <defaults>
</compile_context>

<pallas_src>
import math
from functools import partial

import jax
import jax.numpy as jnp
from jax.experimental import pallas as pl
from jax.experimental.pallas import tpu as pltpu


# ---------------------------------------------------------------------------
# Index map helpers
# ---------------------------------------------------------------------------
def _x_index_map(l, i, k):
    # x only feeds layer 0's hpre hoist (the i == 0 K sweep).  Pin the block
    # index everywhere else so Pallas does not keep re-streaming x from HBM
    # (a DMA is only issued when the block index changes between grid steps).
    return jnp.where(jnp.logical_and(l == 0, i == 0), k, 0), 0


# ---------------------------------------------------------------------------
# Fused kernel
# ---------------------------------------------------------------------------
def _fused_gcn_linear_kernel(adj_ref, x_ref, w_ref, lw_ref, b_ref, o_ref,
                             h_scr, hpre_scr, acc_scr, *, tm, tk):
    """Grid = (layer l, row-tile i, K-chunk k); K (reduction) innermost.

    adj_ref : (tm, tk)  bf16  adjacency tile   rows [i*tm, ...), cols [k*tk, ...)
    x_ref   : (tk, fp)  bf16  input feature chunk (only meaningful at l==0,i==0)
    w_ref   : (fp, fp)  bf16  encoder weight of layer l (zero padded)
    lw_ref  : (fp, fp)  bf16  linear weight, already transposed to [in, out]
    b_ref   : (1,  fp)  f32   linear bias (zero padded)
    o_ref   : (tm, fp)  f32   output row tile (written only at the last layer)
    h_scr   : (Np, fp)  bf16  resident node features between layers
    hpre_scr: (Np, fp)  bf16  hoisted  h_prev @ W_l  for the whole node set
    acc_scr : (tm, fp)  f32   K-reduction accumulator for the current row tile
    """
    l = pl.program_id(0)
    i = pl.program_id(1)
    k = pl.program_id(2)
    nl = pl.num_programs(0)
    nk = pl.num_programs(2)

    k_off = pl.multiple_of(k * tk, tk)

    # -- hpre hoist: computed once per (layer, K-chunk) during the i == 0
    #    sweep; every later row tile of this layer reuses it from VMEM.
    #    Layer 0 reads the raw node features straight from x (no h seeding).
    @pl.when((i == 0) & (l == 0))
    def _hpre_layer0():
        hp = jnp.dot(x_ref[...], w_ref[...], preferred_element_type=jnp.float32)
        hpre_scr[pl.ds(k_off, tk), :] = hp.astype(hpre_scr.dtype)

    @pl.when((i == 0) & (l > 0))
    def _hpre_later():
        h_prev = h_scr[pl.ds(k_off, tk), :]
        hp = jnp.dot(h_prev, w_ref[...], preferred_element_type=jnp.float32)
        hpre_scr[pl.ds(k_off, tk), :] = hp.astype(hpre_scr.dtype)

    # -- K reduction: acc += adj_tile @ hpre_chunk (zero-init fused into k==0).
    part = jnp.dot(adj_ref[...], hpre_scr[pl.ds(k_off, tk), :],
                   preferred_element_type=jnp.float32)

    @pl.when(k == 0)
    def _acc_init():
        acc_scr[...] = part

    @pl.when(k > 0)
    def _acc_add():
        acc_scr[...] += part

    # -- End of the K reduction for this row tile: ReLU, then either hand the
    #    tile to the next layer (resident h) or run the fused nn.Linear
    #    epilogue (dropout is identity in eval mode).
    @pl.when(k == nk - 1)
    def _finalize():
        h_new = jnp.maximum(acc_scr[...], 0.0).astype(h_scr.dtype)

        @pl.when(l < nl - 1)
        def _store_h():
            i_off = pl.multiple_of(i * tm, tm)
            h_scr[pl.ds(i_off, tm), :] = h_new

        @pl.when(l == nl - 1)
        def _linear_epilogue():
            out = jnp.dot(h_new, lw_ref[...], preferred_element_type=jnp.float32)
            o_ref[...] = (out + b_ref[...]).astype(o_ref.dtype)


# ---------------------------------------------------------------------------
# Wrapper
# ---------------------------------------------------------------------------
def _round_up(v, m):
    return ((v + m - 1) // m) * m


def _pad2d(a, rows, cols):
    return jnp.pad(a, ((0, rows - a.shape[0]), (0, cols - a.shape[1])))


def gcn_linear_forward(x, adjs, enc_weights, lin_w, lin_b, *, tm=256, tk=512):
    """Full GCNLinear forward: GCN encoder -> (dropout = identity) -> linear."""
    n, f_in = x.shape
    out_features, lin_in = lin_w.shape
    num_layers = len(adjs)
    assert num_layers >= 1 and len(enc_weights) == num_layers
    assert tm % 128 == 0 and tk % 128 == 0

    # Lane-dense common feature width (multiple of 128) shared by all layers.
    # TODO(synk): per-layer padded widths would avoid wasted MXU work when one
    # layer is much wider than the others.
    feat_max = max([f_in, lin_in, out_features] + [w.shape[1] for w in enc_weights])
    fp = max(128, _round_up(feat_max, 128))
    # Node count padded so both the row tile (tm) and the K tile (tk) divide it.
    np_ = _round_up(n, math.lcm(tm, tk))

    # Pack / pad / cast once outside the kernel (bf16 MXU operands).
    adj_stack = jnp.stack([_pad2d(a.astype(jnp.bfloat16), np_, np_) for a in adjs])
    x_p = _pad2d(x.astype(jnp.bfloat16), np_, fp)
    w_stack = jnp.stack([_pad2d(w.astype(jnp.bfloat16), fp, fp) for w in enc_weights])
    lin_w_t = _pad2d(lin_w.T.astype(jnp.bfloat16), fp, fp)     # transpose once, here
    lin_b_p = _pad2d(lin_b.reshape(1, -1).astype(jnp.float32), 1, fp)

    ni = np_ // tm
    nk = np_ // tk

    # VMEM budget: double-buffered pipeline blocks + resident scratch.
    vmem_bytes = (
        2 * tm * tk * 2            # adj tile double buffer (bf16)
        + 2 * tk * fp * 2          # x chunk
        + 2 * fp * fp * 2          # encoder W_l
        + 2 * fp * fp * 2          # linear W^T
        + 2 * fp * 4               # bias
        + 2 * tm * fp * 4          # output tile (f32)
        + 2 * np_ * fp * 2         # resident h + hpre (bf16)
        + tm * fp * 4              # f32 accumulator
    )
    vmem_limit = min(max(int(vmem_bytes * 1.5) + (4 << 20), 32 << 20), 128 << 20)

    out_p = pl.pallas_call(
        partial(_fused_gcn_linear_kernel, tm=tm, tk=tk),
        out_shape=jax.ShapeDtypeStruct((np_, fp), jnp.float32),
        grid_spec=pltpu.PrefetchScalarGridSpec(
            num_scalar_prefetch=0,
            grid=(num_layers, ni, nk),
            in_specs=[
                pl.BlockSpec((None, tm, tk), lambda l, i, k: (l, i, k)),   # adj tile
                pl.BlockSpec((tk, fp), _x_index_map),                      # x chunk
                pl.BlockSpec((None, fp, fp), lambda l, i, k: (l, 0, 0)),   # enc W_l
                pl.BlockSpec((fp, fp), lambda l, i, k: (0, 0)),            # lin W^T
                pl.BlockSpec((1, fp), lambda l, i, k: (0, 0)),             # lin bias
            ],
            # Row-tiled output; non-final layers write back stale buffer
            # contents, overwritten by the final layer's (last) visits.
            out_specs=pl.BlockSpec((tm, fp), lambda l, i, k: (i, 0)),
            scratch_shapes=[
                pltpu.VMEM((np_, fp), jnp.bfloat16),   # resident h between layers
                pltpu.VMEM((np_, fp), jnp.bfloat16),   # hoisted h_prev @ W_l
                pltpu.VMEM((tm, fp), jnp.float32),     # per-row-tile accumulator
            ],
        ),
        compiler_params=pltpu.CompilerParams(
            # layer / row-tile / K all carry dependencies through the resident
            # h / hpre / acc scratches -> sequential.
            dimension_semantics=("arbitrary", "arbitrary", "arbitrary"),
            vmem_limit_bytes=vmem_limit,
        ),
    )(adj_stack, x_p, w_stack, lin_w_t, lin_b_p)

    return out_p[:n, :out_features]


# ---------------------------------------------------------------------------
# Main
# ---------------------------------------------------------------------------
if __name__ == "__main__":
    key = jax.random.PRNGKey(0)
    k_x, k_a0, k_a1, k_w0, k_w1, k_lw, k_lb = jax.random.split(key, 7)

    # Small synthetic GCN problem (exercises row & feature padding and, with
    # the small-tile run below, multiple row tiles + a multi-chunk K sweep).
    n_nodes = 300
    in_features = 48     # raw node feature dim
    hidden = 64          # encoder hidden dim
    out_features = 10    # nn.Linear out_features

    x = jax.random.normal(k_x, (n_nodes, in_features), dtype=jnp.float32)

    def make_adj(k):
        # symmetric normalized-ish adjacency with self loops (dense, synthetic)
        a = (jax.random.uniform(k, (n_nodes, n_nodes)) > 0.9).astype(jnp.float32)
        a = jnp.maximum(a, a.T) + jnp.eye(n_nodes, dtype=jnp.float32)
        deg = jnp.sum(a, axis=1, keepdims=True)
        return a / deg

    adjs = [make_adj(k_a0), make_adj(k_a1)]

    # Encoder weights (one per adjacency / GCN layer).
    w0 = jax.random.normal(k_w0, (in_features, hidden), dtype=jnp.float32) * 0.1
    w1 = jax.random.normal(k_w1, (hidden, hidden), dtype=jnp.float32) * 0.1
    enc_weights = [w0, w1]

    # nn.Linear(in_features=hidden, out_features=out_features, bias=True)
    lin_w = jax.random.normal(k_lw, (out_features, hidden), dtype=jnp.float32) * 0.1
    lin_b = jax.random.normal(k_lb, (out_features,), dtype=jnp.float32) * 0.1

    # Default (large) tiles: single K chunk at this problem size.
    out_big = gcn_linear_forward(x, adjs, enc_weights, lin_w, lin_b)
    # Small tiles: exercises the multi-chunk K reduction and hpre reuse paths.
    out_small = gcn_linear_forward(x, adjs, enc_weights, lin_w, lin_b,
                                   tm=128, tk=128)
    out_big, out_small = jax.block_until_ready((out_big, out_small))
    assert out_big.shape == (n_nodes, out_features)
    assert out_small.shape == (n_nodes, out_features)

    # Pure-JAX reference with matched numerics: bf16 operands, f32 accumulate,
    # bf16 re-store of intermediates (mirrors the kernel's MXU path).
    def bf(a):
        return a.astype(jnp.bfloat16).astype(jnp.float32)

    h_ref = bf(x)
    for adj, w in zip(adjs, enc_weights):
        hpre = bf(h_ref @ bf(w))
        h_ref = bf(jnp.maximum(bf(adj) @ hpre, 0.0))
    ref = h_ref @ bf(lin_w.T) + lin_b

    err_big = float(jnp.max(jnp.abs(out_big - ref)))
    err_small = float(jnp.max(jnp.abs(out_small - ref)))
    assert jnp.allclose(out_big, ref, atol=5e-3, rtol=5e-3), err_big
    assert jnp.allclose(out_small, ref, atol=5e-3, rtol=5e-3), err_small

    print("KERNEL_OK")
</pallas_src>

<mosaic_0001>
module attributes {stable_mosaic.version = 11 : i64} {
  func.func @_fused_gcn_linear_kernel(%arg0: i32, %arg1: i32, %arg2: i32, %arg3: memref<1x256x512xbf16, #tpu.memory_space<vmem>>, %arg4: memref<512x128xbf16, #tpu.memory_space<vmem>>, %arg5: memref<1x128x128xbf16, #tpu.memory_space<vmem>>, %arg6: memref<128x128xbf16, #tpu.memory_space<vmem>>, %arg7: memref<1x128xf32, #tpu.memory_space<vmem>>, %arg8: memref<256x128xf32, #tpu.memory_space<vmem>>, %arg9: memref<512x128xbf16, #tpu.memory_space<vmem>>, %arg10: memref<512x128xbf16, #tpu.memory_space<vmem>>, %arg11: memref<256x128xf32, #tpu.memory_space<vmem>>) attributes {dimension_semantics = [#tpu.dimension_semantics<arbitrary>, #tpu.dimension_semantics<arbitrary>, #tpu.dimension_semantics<arbitrary>], iteration_bounds = array<i64: 2, 2, 1>, scalar_prefetch = 0 : i64, scratch_operands = 3 : i64, tpu.core_type = #tpu.core_type<tc>, window_params = [{transform_indices = @transform_0, window_bounds = array<i64: 1, 256, 512>}, {transform_indices = @transform_1, window_bounds = array<i64: 512, 128>}, {transform_indices = @transform_2, window_bounds = array<i64: 1, 128, 128>}, {pipeline_mode = #tpu.pipeline_mode<synchronous>, transform_indices = @transform_3, window_bounds = array<i64: 128, 128>}, {pipeline_mode = #tpu.pipeline_mode<synchronous>, transform_indices = @transform_4, window_bounds = array<i64: 1, 128>}, {transform_indices = @transform_5, window_bounds = array<i64: 256, 128>}]} {
    %c512_i32 = arith.constant 512 : i32
    %0 = arith.muli %arg2, %c512_i32 : i32
    %1 = tpu.assume_multiple %0, 512 : i32
    %c0_i32 = arith.constant 0 : i32
    %2 = arith.cmpi eq, %arg1, %c0_i32 : i32
    %c0_i32_0 = arith.constant 0 : i32
    %3 = arith.cmpi eq, %arg0, %c0_i32_0 : i32
    %4 = arith.andi %2, %3 : i1
    %5 = arith.extui %4 : i1 to i32
    %c0_i32_1 = arith.constant 0 : i32
    %6 = arith.cmpi ne, %5, %c0_i32_1 : i32
    scf.if %6 {
      %c0_14 = arith.constant 0 : index
      %c0_15 = arith.constant 0 : index
      %26 = vector.load %arg4[%c0_14, %c0_15] : memref<512x128xbf16, #tpu.memory_space<vmem>>, vector<512x128xbf16>
      %c0_16 = arith.constant 0 : index
      %c0_17 = arith.constant 0 : index
      %c0_18 = arith.constant 0 : index
      %27 = vector.load %arg5[%c0_16, %c0_17, %c0_18] : memref<1x128x128xbf16, #tpu.memory_space<vmem>>, vector<1x128x128xbf16>
      %28 = vector.shape_cast %27 : vector<1x128x128xbf16> to vector<128x128xbf16>
      %cst_19 = arith.constant dense<0.000000e+00> : vector<512x128xf32>
      %29 = tpu.matmul %26, %28, %cst_19 {dimension_numbers = #tpu.dot_dimension_numbers<[1], [0], [0], [1], [0, 0, 1, 1], [], []>} : vector<512x128xbf16>, vector<128x128xbf16>, vector<512x128xf32> -> vector<512x128xf32>
      %30 = arith.truncf %29 : vector<512x128xf32> to vector<512x128xbf16>
      %31 = arith.index_cast %1 : i32 to index
      %c0_20 = arith.constant 0 : index
      %32 = vector.load %arg10[%31, %c0_20] : memref<512x128xbf16, #tpu.memory_space<vmem>>, vector<512x128xbf16>
      tpu.vector_store %arg10[%31, %c0_20], %30 {strides = array<i32>} : memref<512x128xbf16, #tpu.memory_space<vmem>>, vector<512x128xbf16>,
    } else {
    }
    %c0_i32_2 = arith.constant 0 : i32
    %7 = arith.cmpi eq, %arg1, %c0_i32_2 : i32
    %c0_i32_3 = arith.constant 0 : i32
    %8 = arith.cmpi sgt, %arg0, %c0_i32_3 : i32
    %9 = arith.andi %7, %8 : i1
    %10 = arith.extui %9 : i1 to i32
    %c0_i32_4 = arith.constant 0 : i32
    %11 = arith.cmpi ne, %10, %c0_i32_4 : i32
    scf.if %11 {
      %26 = arith.index_cast %1 : i32 to index
      %c0_14 = arith.constant 0 : index
      %27 = vector.load %arg9[%26, %c0_14] : memref<512x128xbf16, #tpu.memory_space<vmem>>, vector<512x128xbf16>
      %c0_15 = arith.constant 0 : index
      %c0_16 = arith.constant 0 : index
      %c0_17 = arith.constant 0 : index
      %28 = vector.load %arg5[%c0_15, %c0_16, %c0_17] : memref<1x128x128xbf16, #tpu.memory_space<vmem>>, vector<1x128x128xbf16>
      %29 = vector.shape_cast %28 : vector<1x128x128xbf16> to vector<128x128xbf16>
      %cst_18 = arith.constant dense<0.000000e+00> : vector<512x128xf32>
      %30 = tpu.matmul %27, %29, %cst_18 {dimension_numbers = #tpu.dot_dimension_numbers<[1], [0], [0], [1], [0, 0, 1, 1], [], []>} : vector<512x128xbf16>, vector<128x128xbf16>, vector<512x128xf32> -> vector<512x128xf32>
      %31 = arith.truncf %30 : vector<512x128xf32> to vector<512x128xbf16>
      %32 = arith.index_cast %1 : i32 to index
      %c0_19 = arith.constant 0 : index
      %33 = vector.load %arg10[%32, %c0_19] : memref<512x128xbf16, #tpu.memory_space<vmem>>, vector<512x128xbf16>
      tpu.vector_store %arg10[%32, %c0_19], %31 {strides = array<i32>} : memref<512x128xbf16, #tpu.memory_space<vmem>>, vector<512x128xbf16>,
    } else {
    }
    %c0 = arith.constant 0 : index
    %c0_5 = arith.constant 0 : index
    %c0_6 = arith.constant 0 : index
    %12 = vector.load %arg3[%c0, %c0_5, %c0_6] : memref<1x256x512xbf16, #tpu.memory_space<vmem>>, vector<1x256x512xbf16>
    %13 = vector.shape_cast %12 : vector<1x256x512xbf16> to vector<256x512xbf16>
    %14 = arith.index_cast %1 : i32 to index
    %c0_7 = arith.constant 0 : index
    %15 = vector.load %arg10[%14, %c0_7] : memref<512x128xbf16, #tpu.memory_space<vmem>>, vector<512x128xbf16>
    %cst = arith.constant dense<0.000000e+00> : vector<256x128xf32>
    %16 = tpu.matmul %13, %15, %cst {dimension_numbers = #tpu.dot_dimension_numbers<[1], [0], [0], [1], [0, 0, 1, 1], [], []>} : vector<256x512xbf16>, vector<512x128xbf16>, vector<256x128xf32> -> vector<256x128xf32>
    %c0_i32_8 = arith.constant 0 : i32
    %17 = arith.cmpi eq, %arg2, %c0_i32_8 : i32
    %18 = arith.extui %17 : i1 to i32
    %c0_i32_9 = arith.constant 0 : i32
    %19 = arith.cmpi ne, %18, %c0_i32_9 : i32
    scf.if %19 {
      %c0_14 = arith.constant 0 : index
      %c0_15 = arith.constant 0 : index
      %26 = vector.load %arg11[%c0_14, %c0_15] : memref<256x128xf32, #tpu.memory_space<vmem>>, vector<256x128xf32>
      tpu.vector_store %arg11[%c0_14, %c0_15], %16 {strides = array<i32>} : memref<256x128xf32, #tpu.memory_space<vmem>>, vector<256x128xf32>,
    } else {
    }
    %c0_i32_10 = arith.constant 0 : i32
    %20 = arith.cmpi sgt, %arg2, %c0_i32_10 : i32
    %21 = arith.extui %20 : i1 to i32
    %c0_i32_11 = arith.constant 0 : i32
    %22 = arith.cmpi ne, %21, %c0_i32_11 : i32
    scf.if %22 {
      %c0_14 = arith.constant 0 : index
      %c0_15 = arith.constant 0 : index
      %26 = vector.load %arg11[%c0_14, %c0_15] : memref<256x128xf32, #tpu.memory_space<vmem>>, vector<256x128xf32>
      %27 = arith.addf %26, %16 : vector<256x128xf32>
      %c0_16 = arith.constant 0 : index
      %c0_17 = arith.constant 0 : index
      %28 = vector.load %arg11[%c0_16, %c0_17] : memref<256x128xf32, #tpu.memory_space<vmem>>, vector<256x128xf32>
      tpu.vector_store %arg11[%c0_16, %c0_17], %27 {strides = array<i32>} : memref<256x128xf32, #tpu.memory_space<vmem>>, vector<256x128xf32>,
    } else {
    }
    %c0_i32_12 = arith.constant 0 : i32
    %23 = arith.cmpi eq, %arg2, %c0_i32_12 : i32
    %24 = arith.extui %23 : i1 to i32
    %c0_i32_13 = arith.constant 0 : i32
    %25 = arith.cmpi ne, %24, %c0_i32_13 : i32
    scf.if %25 {
      %c0_14 = arith.constant 0 : index
      %c0_15 = arith.constant 0 : index
      %26 = vector.load %arg11[%c0_14, %c0_15] : memref<256x128xf32, #tpu.memory_space<vmem>>, vector<256x128xf32>
      %cst_16 = arith.constant 0.000000e+00 : f32
      %27 = vector.broadcast %cst_16 : f32 to vector<256x128xf32>
      %28 = arith.maximumf %26, %27 : vector<256x128xf32>
      %29 = arith.truncf %28 : vector<256x128xf32> to vector<256x128xbf16>
      %c1_i32 = arith.constant 1 : i32
      %30 = arith.cmpi slt, %arg0, %c1_i32 : i32
      %31 = arith.extui %30 : i1 to i32
      %c0_i32_17 = arith.constant 0 : i32
      %32 = arith.cmpi ne, %31, %c0_i32_17 : i32
      scf.if %32 {
        %c256_i32 = arith.constant 256 : i32
        %36 = arith.muli %arg1, %c256_i32 : i32
        %37 = tpu.assume_multiple %36, 256 : i32
        %38 = arith.index_cast %37 : i32 to index
        %c0_20 = arith.constant 0 : index
        %39 = vector.load %arg9[%38, %c0_20] : memref<512x128xbf16, #tpu.memory_space<vmem>>, vector<256x128xbf16>
        tpu.vector_store %arg9[%38, %c0_20], %29 {strides = array<i32>} : memref<512x128xbf16, #tpu.memory_space<vmem>>, vector<256x128xbf16>,
      } else {
      }
      %c1_i32_18 = arith.constant 1 : i32
      %33 = arith.cmpi eq, %arg0, %c1_i32_18 : i32
      %34 = arith.extui %33 : i1 to i32
      %c0_i32_19 = arith.constant 0 : i32
      %35 = arith.cmpi ne, %34, %c0_i32_19 : i32
      scf.if %35 {
        %c0_20 = arith.constant 0 : index
        %c0_21 = arith.constant 0 : index
        %36 = vector.load %arg6[%c0_20, %c0_21] : memref<128x128xbf16, #tpu.memory_space<vmem>>, vector<128x128xbf16>
        %cst_22 = arith.constant dense<0.000000e+00> : vector<256x128xf32>
        %37 = tpu.matmul %29, %36, %cst_22 {dimension_numbers = #tpu.dot_dimension_numbers<[1], [0], [0], [1], [0, 0, 1, 1], [], []>} : vector<256x128xbf16>, vector<128x128xbf16>, vector<256x128xf32> -> vector<256x128xf32>
        %c0_23 = arith.constant 0 : index
        %c0_24 = arith.constant 0 : index
        %38 = vector.load %arg7[%c0_23, %c0_24] : memref<1x128xf32, #tpu.memory_space<vmem>>, vector<1x128xf32>
        %39 = vector.broadcast %38 : vector<1x128xf32> to vector<256x128xf32>
        %40 = arith.addf %37, %39 : vector<256x128xf32>
        %c0_25 = arith.constant 0 : index
        %c0_26 = arith.constant 0 : index
        %41 = vector.load %arg8[%c0_25, %c0_26] : memref<256x128xf32, #tpu.memory_space<vmem>>, vector<256x128xf32>
        tpu.vector_store %arg8[%c0_25, %c0_26], %40 {strides = array<i32>} : memref<256x128xf32, #tpu.memory_space<vmem>>, vector<256x128xf32>,
      } else {
      }
    } else {
    }
    return
  }
  func.func @transform_0(%arg0: i32, %arg1: i32, %arg2: i32) -> (i32, i32, i32) {
    %c0_i32 = arith.constant 0 : i32
    return %arg0, %arg1, %arg2 : i32, i32, i32
  }
  func.func @transform_1(%arg0: i32, %arg1: i32, %arg2: i32) -> (i32, i32) {
    %c0_i32 = arith.constant 0 : i32
    %0 = arith.cmpi eq, %arg0, %c0_i32 : i32
    %c0_i32_0 = arith.constant 0 : i32
    %1 = arith.cmpi eq, %arg1, %c0_i32_0 : i32
    %2 = arith.andi %0, %1 : i1
    %c0_i32_1 = arith.constant 0 : i32
    %3 = arith.select %2, %arg2, %c0_i32_1 : i32
    %c0_i32_2 = arith.constant 0 : i32
    %c0_i32_3 = arith.constant 0 : i32
    return %3, %c0_i32_2 : i32, i32
  }
  func.func @transform_2(%arg0: i32, %arg1: i32, %arg2: i32) -> (i32, i32, i32) {
    %c0_i32 = arith.constant 0 : i32
    %c0_i32_0 = arith.constant 0 : i32
    %c0_i32_1 = arith.constant 0 : i32
    return %arg0, %c0_i32, %c0_i32_0 : i32, i32, i32
  }
  func.func @transform_3(%arg0: i32, %arg1: i32, %arg2: i32) -> (i32, i32) {
    %c0_i32 = arith.constant 0 : i32
    %c0_i32_0 = arith.constant 0 : i32
    %c0_i32_1 = arith.constant 0 : i32
    return %c0_i32, %c0_i32_0 : i32, i32
  }
  func.func @transform_4(%arg0: i32, %arg1: i32, %arg2: i32) -> (i32, i32) {
    %c0_i32 = arith.constant 0 : i32
    %c0_i32_0 = arith.constant 0 : i32
    %c0_i32_1 = arith.constant 0 : i32
    return %c0_i32, %c0_i32_0 : i32, i32
  }
  func.func @transform_5(%arg0: i32, %arg1: i32, %arg2: i32) -> (i32, i32) {
    %c0_i32 = arith.constant 0 : i32
    %c0_i32_0 = arith.constant 0 : i32
    return %arg1, %c0_i32 : i32, i32
  }
}

</mosaic_0001>

<llo_original>
// kernel: tpu_custom_call.1
$region0: #{tpu_custom_call.1}
  #allocation0 [shape = 'u32[]', space=smem, size = 0x4, offset = 0x4, fixed_abs, tag = 'smem constant byte address 0x4 - core index']
  #allocation1 [shape = 'u32[144,128]{1,0:T(1,128)}', space=vmem, size = 0x12000, scoped, tag = 'internal scratch']
  #allocation2 [shape = 'bf16[512,128]{1,0:T(16,128)(2,1)}', space=vmem, size = 0x20000, scoped, tag = 'scratch operand']
  #allocation3 [shape = 'bf16[512,128]{1,0:T(16,128)(2,1)}', space=vmem, size = 0x20000, scoped, tag = 'scratch operand']
  #allocation4 [shape = 'f32[256,128]{1,0:T(8,128)}', space=vmem, size = 0x20000, scoped, tag = 'scratch operand']
  %s0 = inlined_call_operand.hbm [shape: bf16[2,512,512], index: 0, kind: input, shape index: {}]
  %s1 = inlined_call_operand.hbm [shape: bf16[512,128], index: 1, kind: input, shape index: {}]
  %s2 = inlined_call_operand.hbm [shape: bf16[2,128,128], index: 2, kind: input, shape index: {}]
  %s3 = inlined_call_operand.hbm [shape: bf16[128,128], index: 3, kind: input, shape index: {}]
  %s4 = inlined_call_operand.vmem [shape: f32[1,128], index: 4, kind: input, shape index: {}]
  %s5 = inlined_call_operand.hbm [shape: f32[512,128], index: 5, kind: output, shape index: {}]
  %s6 = sld [smem:[#allocation0]]
  $region97: #{tpu_custom_call.1} parent=0
    _
  %s8 = ssub.s32 1, %s6
  %s9 = scalar_select 0, %s8, %s6
  $region1: #{tpu_custom_call.1} parent=0
    #allocation5 [shape = 'u8[524288]{0}', space=vmem, size = 0x80000, scoped, tag = 'input window, operand 0']
    #allocation6 [shape = 's32[2]{0}', space=sflag, size = 0x8, scoped, tag = 'scoped memory for tpu_custom_call.1']
    #allocation7 [shape = 's32[2]{0}', space=sflag, size = 0x8, scoped, tag = 'scoped memory for tpu_custom_call.1']
    #allocation8 [shape = 'u8[262144]{0}', space=vmem, size = 0x40000, scoped, tag = 'input window, operand 1']
    #allocation9 [shape = 's32[2]{0}', space=sflag, size = 0x8, scoped, tag = 'scoped memory for tpu_custom_call.1']
    #allocation10 [shape = 'u8[65536]{0}', space=vmem, size = 0x10000, scoped, tag = 'input window, operand 2']
    #allocation11 [shape = 'u8[32768]{0}', space=vmem, size = 0x8000, scoped, tag = 'input window, operand 3, single buffered']
    #allocation12 [shape = 's32[1]{0}', space=sflag, size = 0x4, scoped, tag = 'scoped memory for tpu_custom_call.1']
    #allocation13 [shape = 'u8[262144]{0}', space=vmem, size = 0x40000, scoped, tag = 'output window, operand 0']
    %10 = vsyncpa [#allocation6], 0
    %s11 = scalar_lea.sflag [#allocation6], 1
    %12 = vsyncpa %s11, 0
    %13 = vsyncpa [#allocation9], 0
    %s14 = scalar_lea.sflag [#allocation9], 1
    %15 = vsyncpa %s14, 0
    %16 = vsyncpa [#allocation12], 0
    %17 = vsyncpa [#allocation7], 0
    %s18 = scalar_lea.sflag [#allocation7], 1
    %19 = vsyncpa %s18, 0
    loop: start=0, step=1, limit=6
    $region2: #{tpu_custom_call.1} parent=1 // loop_pre_header
      _
    $region3: #{tpu_custom_call.1} parent=1 // loop_header
      %s21 = sphi 0, %s25
      %p22 = scmp.ge.s32.totalorder %s21, 6
      %s28 = sphi 0, %s47
      %s29 = sphi 0, %s43
      %s30 = sphi 0, %s39
      %s31 = sphi 0, %s28
      %s32 = sphi 0, %s29
      %s33 = sphi 0, %s30
      %s34 = sphi 0, %s31
      %s35 = sphi 0, %s32
      %s36 = sphi 0, %s33
      %s54 = sphi 0, %s56
      %s57 = sphi 0, %s54
      %s58 = sphi 0, %s57
      %s74 = sphi 0, %s58
      %s90 = sphi 0, %s92
      %s93 = sphi 0, %s90
      %s94 = sphi 0, %s93
      %s110 = sphi 0, %s94
      %s116 = sphi 0, %s118
      %s119 = sphi 0, %s116
      %s120 = sphi 0, %s119
      %s136 = sphi 0, %s120
      %s140 = sphi 0, %s140
      %s142 = sphi 0, %s140
      %s143 = sphi 0, %s142
      %s157 = sphi 0, %s143
      %s161 = sphi 0, %s161
      %s163 = sphi 0, %s161
      %s164 = sphi 0, %s163
      %s178 = sphi 0, %s164
      %s184 = sphi 0, %s186
      %s187 = sphi 0, %s184
      %s188 = sphi 0, %s187
      %s204 = sphi 0, %s188
    $region4: #{tpu_custom_call.1} parent=1 // loop_header_branch
      %24 = sbr.rel (%p22) target = $region8
    $region5: #{tpu_custom_call.1} parent=1 // loop_body
      %s26 = ssub.s32 %s21, 1
      %s27 = ssub.s32 %s21, 2
      %s37 = sadd.s32 1, %s30
      %p38 = scmp.ge.s32.totalorder %s37, 1
      %s39 = scalar_select %p38, 0, %s37
      %s40 = sadd.s32 1, %s29
      %s41 = scalar_select %p38, %s40, %s29
      %p42 = scmp.ge.s32.totalorder %s41, 2
      %s43 = scalar_select %p42, 0, %s41
      %s44 = sadd.s32 1, %s28
      %s45 = scalar_select %p42, %s44, %s28
      %p46 = scmp.ge.s32.totalorder %s45, 2
      %s47 = scalar_select %p46, 0, %s45
      %s48 = ssub.s32 %s28, %s47
      %s49 = ssub.s32 %s29, %s43
      %s50 = sor.u32 %s48, %s49
      %s51 = ssub.s32 %s30, %s39
      %s52 = sor.u32 %s50, %s51
      %p53 = scmp.eq.s32.totalorder %s52, 0
      %s55 = sadd.s32 %s54, 1
      %s56 = scalar_select %p53, %s54, %s55
      %p59 = pneg %p53
      %p60 = scmp.eq.s32.totalorder %s21, 3
      %p61 = por %p59, %p60
      %p62 = scmp.ne.s32.totalorder %s54, %s57
      %p63 = scmp.eq.s32.totalorder %s21, 0
      %p64 = por %p62, %p63
      %p65 = scmp.ne.s32.totalorder %s54, %s57
      %p66 = scmp.eq.s32.totalorder %s26, 3
      %p67 = por %p65, %p66
      %p68 = scmp.ne.s32.totalorder %s57, %s58
      %p69 = scmp.eq.s32.totalorder %s26, 0
      %p70 = por %p68, %p69
      %p71 = scmp.ne.s32.totalorder %s57, %s58
      %p72 = scmp.eq.s32.totalorder %s27, 3
      %p73 = por %p71, %p72
      %p75 = scmp.ne.s32.totalorder %s58, %s74
      %p76 = scmp.eq.s32.totalorder %s27, 0
      %p77 = por %p75, %p76
      %p78 = scmp.eq.s32.totalorder %s28, 0
      %p79 = scmp.eq.s32.totalorder %s29, 0
      %p80 = pnand %p78, %p79
      %p81 = pneg %p80
      %s82 = scalar_select %p81, %s30, 0
      %p83 = scmp.eq.s32.totalorder %s47, 0
      %p84 = scmp.eq.s32.totalorder %s43, 0
      %p85 = pnand %p83, %p84
      %p86 = pneg %p85
      %s87 = scalar_select %p86, %s39, 0
      %s88 = ssub.s32 %s82, %s87
      %p89 = scmp.eq.s32.totalorder %s88, 0
      %s91 = sadd.s32 %s90, 1
      %s92 = scalar_select %p89, %s90, %s91
      %p95 = pneg %p89
      %p96 = scmp.eq.s32.totalorder %s21, 3
      %p97 = por %p95, %p96
      %p98 = scmp.ne.s32.totalorder %s90, %s93
      %p99 = scmp.eq.s32.totalorder %s21, 0
      %p100 = por %p98, %p99
      %p101 = scmp.ne.s32.totalorder %s90, %s93
      %p102 = scmp.eq.s32.totalorder %s26, 3
      %p103 = por %p101, %p102
      %p104 = scmp.ne.s32.totalorder %s93, %s94
      %p105 = scmp.eq.s32.totalorder %s26, 0
      %p106 = por %p104, %p105
      %p107 = scmp.ne.s32.totalorder %s93, %s94
      %p108 = scmp.eq.s32.totalorder %s27, 3
      %p109 = por %p107, %p108
      %p111 = scmp.ne.s32.totalorder %s94, %s110
      %p112 = scmp.eq.s32.totalorder %s27, 0
      %p113 = por %p111, %p112
      %s114 = ssub.s32 %s28, %s47
      %p115 = scmp.eq.s32.totalorder %s114, 0
      %s117 = sadd.s32 %s116, 1
      %s118 = scalar_select %p115, %s116, %s117
      %p121 = pneg %p115
      %p122 = scmp.eq.s32.totalorder %s21, 3
      %p123 = por %p121, %p122
      %p124 = scmp.ne.s32.totalorder %s116, %s119
      %p125 = scmp.eq.s32.totalorder %s21, 0
      %p126 = por %p124, %p125
      %p127 = scmp.ne.s32.totalorder %s116, %s119
      %p128 = scmp.eq.s32.totalorder %s26, 3
      %p129 = por %p127, %p128
      %p130 = scmp.ne.s32.totalorder %s119, %s120
      %p131 = scmp.eq.s32.totalorder %s26, 0
      %p132 = por %p130, %p131
      %p133 = scmp.ne.s32.totalorder %s119, %s120
      %p134 = scmp.eq.s32.totalorder %s27, 3
      %p135 = por %p133, %p134
      %p137 = scmp.ne.s32.totalorder %s120, %s136
      %p138 = scmp.eq.s32.totalorder %s27, 0
      %p139 = por %p137, %p138
      %s141 = sadd.s32 %s140, 1
      %p144 = scmp.eq.s32.totalorder %s21, 3
      %p145 = scmp.ne.s32.totalorder %s140, %s142
      %p146 = scmp.eq.s32.totalorder %s21, 0
      %p147 = por %p145, %p146
      %p148 = scmp.ne.s32.totalorder %s140, %s142
      %p149 = scmp.eq.s32.totalorder %s26, 3
      %p150 = por %p148, %p149
      %p151 = scmp.ne.s32.totalorder %s142, %s143
      %p152 = scmp.eq.s32.totalorder %s26, 0
      %p153 = por %p151, %p152
      %p154 = scmp.ne.s32.totalorder %s142, %s143
      %p155 = scmp.eq.s32.totalorder %s27, 3
      %p156 = por %p154, %p155
      %p158 = scmp.ne.s32.totalorder %s143, %s157
      %p159 = scmp.eq.s32.totalorder %s27, 0
      %p160 = por %p158, %p159
      %s162 = sadd.s32 %s161, 1
      %p165 = scmp.eq.s32.totalorder %s21, 3
      %p166 = scmp.ne.s32.totalorder %s161, %s163
      %p167 = scmp.eq.s32.totalorder %s21, 0
      %p168 = por %p166, %p167
      %p169 = scmp.ne.s32.totalorder %s161, %s163
      %p170 = scmp.eq.s32.totalorder %s26, 3
      %p171 = por %p169, %p170
      %p172 = scmp.ne.s32.totalorder %s163, %s164
      %p173 = scmp.eq.s32.totalorder %s26, 0
      %p174 = por %p172, %p173
      %p175 = scmp.ne.s32.totalorder %s163, %s164
      %p176 = scmp.eq.s32.totalorder %s27, 3
      %p177 = por %p175, %p176
      %p179 = scmp.ne.s32.totalorder %s164, %s178
      %p180 = scmp.eq.s32.totalorder %s27, 0
      %p181 = por %p179, %p180
      %s182 = ssub.s32 %s29, %s43
      %p183 = scmp.eq.s32.totalorder %s182, 0
      %s185 = sadd.s32 %s184, 1
      %s186 = scalar_select %p183, %s184, %s185
      %p189 = pneg %p183
      %p190 = scmp.eq.s32.totalorder %s21, 3
      %p191 = por %p189, %p190
      %p192 = scmp.ne.s32.totalorder %s184, %s187
      %p193 = scmp.eq.s32.totalorder %s21, 0
      %p194 = por %p192, %p193
      %p195 = scmp.ne.s32.totalorder %s184, %s187
      %p196 = scmp.eq.s32.totalorder %s26, 3
      %p197 = por %p195, %p196
      %p198 = scmp.ne.s32.totalorder %s187, %s188
      %p199 = scmp.eq.s32.totalorder %s26, 0
      %p200 = por %p198, %p199
      %p201 = scmp.ne.s32.totalorder %s187, %s188
      %p202 = scmp.eq.s32.totalorder %s27, 3
      %p203 = por %p201, %p202
      %p205 = scmp.ne.s32.totalorder %s188, %s204
      %p206 = scmp.eq.s32.totalorder %s27, 0
      %p207 = por %p205, %p206
      %p208 = scmp.le.s32.totalorder 1, %s21
      %p209 = scmp.lt.s32.totalorder %s21, 5
      %p210 = pnand %p208, %p209
      %p211 = pneg %p210
      // Predicated region
      $region9: #{tpu_custom_call.1} parent=5 // pred_check
        _
      $region10: #{tpu_custom_call.1} parent=5 // pred_check_branch
        %213 = sbr.rel (%p210) target = $region12
      $region11: #{tpu_custom_call.1} parent=5 // pred_region
        %s214 = ssub.s32 %s21, 1
        // Predicated region
        $region13: #{tpu_custom_call.1} parent=11 // pred_check
          %p215 = pneg %p153
        $region14: #{tpu_custom_call.1} parent=11 // pred_check_branch
          %217 = sbr.rel (%p215) target = $region16
        $region15: #{tpu_custom_call.1} parent=11 // pred_region
          %s219 = ssub.s32 1024, 1024
          %220 = vsyncadd [#allocation12], %s219
          %s221 = sshll.u32 [#allocation11], 4
          %s222 = int_to_ptr.vmem [resolvable:$true] %s221
          %227 = dma.hbm_to_vmem [thread:$0]  %s3, 1024, %s222, [#allocation12], 64, 64, 4
        $region16: #{tpu_custom_call.1} parent=11 // pred_fallthru
          _
        // Predicated region
        $region17: #{tpu_custom_call.1} parent=11 // pred_check
          %p228 = pneg %p174
        $region18: #{tpu_custom_call.1} parent=11 // pred_check_branch
          %230 = sbr.rel (%p228) target = $region20
        $region19: #{tpu_custom_call.1} parent=11 // pred_region
          _
        $region20: #{tpu_custom_call.1} parent=11 // pred_fallthru
          _
      $region12: #{tpu_custom_call.1} parent=5 // pred_fallthru
        _
      %p231 = scmp.lt.s32.totalorder %s21, 4
      // Predicated region
      $region21: #{tpu_custom_call.1} parent=5 // pred_check
        %p232 = pneg %p231
      $region22: #{tpu_custom_call.1} parent=5 // pred_check_branch
        %234 = sbr.rel (%p232) target = $region24
      $region23: #{tpu_custom_call.1} parent=5 // pred_region
        // Predicated region
        $region25: #{tpu_custom_call.1} parent=23 // pred_check
          %p235 = pneg %p64
        $region26: #{tpu_custom_call.1} parent=23 // pred_check_branch
          %237 = sbr.rel (%p235) target = $region28
        $region27: #{tpu_custom_call.1} parent=23 // pred_region
          %s238 = sand.u32 %s54, 1
          %s239 = scalar_lea.sflag [#allocation6], %s238
          %s240 = sand.u32 %s54, 1
          %s241 = smul.addr %s240, 512
          %s242 = scalar_lea.vmem [#allocation5], %s241
          %s243 = smul.u32 32, %s29
          %s244 = smul.u32 4, %s30
          %s246 = ssub.s32 8192, 8192
          %247 = vsyncadd %s239, %s246
          %s248 = smul.addr %s243, 4
          %s249 = sadd.s32 %s244, %s248
          %s250 = smul.addr %s28, 256
          %s251 = sadd.s32 %s249, %s250
          %s252 = smul.addr %s251, 64
          %s253 = scalar_lea.hbm %s0, %s252
          %s254 = sshll.u32 %s242, 4
          %s255 = int_to_ptr.vmem [resolvable:$true] %s254
          %260 = dma.hbm_to_vmem [thread:$0]  %s253, 8192, %s255, %s239, 256, 256, 16
        $region28: #{tpu_custom_call.1} parent=23 // pred_fallthru
          _
        // Predicated region
        $region29: #{tpu_custom_call.1} parent=23 // pred_check
          %p261 = pneg %p100
        $region30: #{tpu_custom_call.1} parent=23 // pred_check_branch
          %263 = sbr.rel (%p261) target = $region32
        $region31: #{tpu_custom_call.1} parent=23 // pred_region
          %s264 = sand.u32 %s21, 1
          %s265 = scalar_lea.sflag [#allocation9], %s264
          %s266 = sand.u32 %s90, 1
          %s267 = smul.addr %s266, 256
          %s268 = scalar_lea.vmem [#allocation8], %s267
          %p269 = scmp.eq.s32.totalorder %s28, 0
          %p270 = scmp.eq.s32.totalorder %s29, 0
          %p271 = pnand %p269, %p270
          %p272 = pneg %p271
          %s273 = scalar_select %p272, %s30, 0
          %s274 = smul.u32 64, %s273
          %s276 = ssub.s32 4096, 4096
          %277 = vsyncadd %s265, %s276
          %s278 = smul.addr %s274, 64
          %s279 = scalar_lea.hbm %s1, %s278
          %s280 = sshll.u32 %s268, 4
          %s281 = int_to_ptr.vmem [resolvable:$true] %s280
          %286 = dma.hbm_to_vmem [thread:$0]  %s279, 4096, %s281, %s265, 64, 64, 4
        $region32: #{tpu_custom_call.1} parent=23 // pred_fallthru
          _
        // Predicated region
        $region33: #{tpu_custom_call.1} parent=23 // pred_check
          %p287 = pneg %p126
        $region34: #{tpu_custom_call.1} parent=23 // pred_check_branch
          %289 = sbr.rel (%p287) target = $region36
        $region35: #{tpu_custom_call.1} parent=23 // pred_region
          %s290 = sand.u32 %s21, 1
          %s291 = scalar_lea.sflag [#allocation9], %s290
          %s292 = sand.u32 %s116, 1
          %s293 = smul.addr %s292, 64
          %s294 = scalar_lea.vmem [#allocation10], %s293
          %s296 = ssub.s32 1024, 1024
          %297 = vsyncadd %s291, %s296
          %s298 = smul.addr %s28, 16
          %s299 = smul.addr %s298, 64
          %s300 = scalar_lea.hbm %s2, %s299
          %s301 = sshll.u32 %s294, 4
          %s302 = int_to_ptr.vmem [resolvable:$true] %s301
          %307 = dma.hbm_to_vmem [thread:$0]  %s300, 1024, %s302, %s291, 64, 64, 4
        $region36: #{tpu_custom_call.1} parent=23 // pred_fallthru
          _
      $region24: #{tpu_custom_call.1} parent=5 // pred_fallthru
        _
      %p308 = scmp.le.s32.totalorder 1, %s21
      %p309 = scmp.lt.s32.totalorder %s21, 5
      %p310 = pnand %p308, %p309
      %p311 = pneg %p310
      // Predicated region
      $region37: #{tpu_custom_call.1} parent=5 // pred_check
        _
      $region38: #{tpu_custom_call.1} parent=5 // pred_check_branch
        %313 = sbr.rel (%p310) target = $region40
      $region39: #{tpu_custom_call.1} parent=5 // pred_region
        %s314 = ssub.s32 %s21, 1
        %s315 = sand.u32 %s57, 1
        %s316 = scalar_lea.sflag [#allocation6], %s315
        %s317 = sand.u32 %s57, 1
        %s318 = smul.addr %s317, 512
        %s319 = scalar_lea.vmem [#allocation5], %s318
        // Predicated region
        $region41: #{tpu_custom_call.1} parent=39 // pred_check
          %p320 = pneg %p70
        $region42: #{tpu_custom_call.1} parent=39 // pred_check_branch
          %322 = sbr.rel (%p320) target = $region44
        $region43: #{tpu_custom_call.1} parent=39 // pred_region
          %323 = dma.done %s316, 8192
        $region44: #{tpu_custom_call.1} parent=39 // pred_fallthru
          _
        %s324 = sand.u32 %s26, 1
        %s325 = scalar_lea.sflag [#allocation9], %s324
        %s326 = sand.u32 %s93, 1
        %s327 = smul.addr %s326, 256
        %s328 = scalar_lea.vmem [#allocation8], %s327
        // Predicated region
        $region45: #{tpu_custom_call.1} parent=39 // pred_check
          %p329 = pneg %p106
        $region46: #{tpu_custom_call.1} parent=39 // pred_check_branch
          %331 = sbr.rel (%p329) target = $region48
        $region47: #{tpu_custom_call.1} parent=39 // pred_region
          %332 = dma.done %s325, 4096
        $region48: #{tpu_custom_call.1} parent=39 // pred_fallthru
          _
        %s333 = sand.u32 %s26, 1
        %s334 = scalar_lea.sflag [#allocation9], %s333
        %s335 = sand.u32 %s119, 1
        %s336 = smul.addr %s335, 64
        %s337 = scalar_lea.vmem [#allocation10], %s336
        // Predicated region
        $region49: #{tpu_custom_call.1} parent=39 // pred_check
          %p338 = pneg %p132
        $region50: #{tpu_custom_call.1} parent=39 // pred_check_branch
          %340 = sbr.rel (%p338) target = $region52
        $region51: #{tpu_custom_call.1} parent=39 // pred_region
          %341 = dma.done %s334, 1024
        $region52: #{tpu_custom_call.1} parent=39 // pred_fallthru
          _
        // Predicated region
        $region53: #{tpu_custom_call.1} parent=39 // pred_check
          %p342 = pneg %p153
        $region54: #{tpu_custom_call.1} parent=39 // pred_check_branch
          %344 = sbr.rel (%p342) target = $region56
        $region55: #{tpu_custom_call.1} parent=39 // pred_region
          %345 = dma.done [#allocation12], 1024
        $region56: #{tpu_custom_call.1} parent=39 // pred_fallthru
          _
        %s346 = sand.u32 %s57, 1
        %s347 = scalar_lea.sflag [#allocation6], %s346
        %s348 = sand.u32 %s57, 1
        %s349 = smul.addr %s348, 512
        %s350 = scalar_lea.vmem [#allocation5], %s349
        %p351 = pneg %p70
        %p352 = pneg %p67
        %s353 = sand.u32 %s26, 1
        %s354 = scalar_lea.sflag [#allocation9], %s353
        %s355 = sand.u32 %s93, 1
        %s356 = smul.addr %s355, 256
        %s357 = scalar_lea.vmem [#allocation8], %s356
        %p358 = pneg %p106
        %p359 = pneg %p103
        %s360 = sand.u32 %s26, 1
        %s361 = scalar_lea.sflag [#allocation9], %s360
        %s362 = sand.u32 %s119, 1
        %s363 = smul.addr %s362, 64
        %s364 = scalar_lea.vmem [#allocation10], %s363
        %p365 = pneg %p132
        %p366 = pneg %p129
        %p367 = pneg %p153
        %p368 = pneg %p150
        %p369 = pneg %p174
        %p370 = pneg %p171
        %p371 = pneg %p200
        %p372 = pneg %p197
        %s373 = sand.u32 %s187, 1
        %s374 = scalar_lea.sflag [#allocation7], %s373
        %s375 = sand.u32 %s187, 1
        %s376 = smul.addr %s375, 256
        %s377 = scalar_lea.vmem [#allocation13], %s376
        %s378 = smul.u32 32, %s32
        %s379 = smul.u32 4, %s33
        %p380 = scmp.eq.s32.totalorder %s31, 0
        %p381 = scmp.eq.s32.totalorder %s32, 0
        %p382 = pnand %p380, %p381
        %p383 = pneg %p382
        %s384 = scalar_select %p383, %s33, 0
        %s385 = smul.u32 64, %s384
        %s386 = smul.u32 32, %s32
        %s388 = smul.u32 %s33, 512
        %p389 = scmp.eq.s32.totalorder %s32, 0
        %p390 = scmp.eq.s32.totalorder %s31, 0
        %p391 = pnand %p389, %p390
        %p392 = pneg %p391
        // Predicated region
        $region57: #{tpu_custom_call.1} parent=39 // pred_check
          _
        $region58: #{tpu_custom_call.1} parent=39 // pred_check_branch
          %394 = sbr.rel (%p391) target = $region60
        $region59: #{tpu_custom_call.1} parent=39 // pred_region
          %v395 = vld [vmem:[%s328] sm:$0xf]
          %v396 = vld [vmem:[%s328 + $0x4] sm:$0xf]
          %v397 = vld [vmem:[%s328 + $0x8] sm:$0xf]
          %v398 = vld [vmem:[%s328 + $0xc] sm:$0xf]
          %v399 = vld [vmem:[%s328 + $0x10] sm:$0xf]
          %v400 = vld [vmem:[%s328 + $0x14] sm:$0xf]
          %v401 = vld [vmem:[%s328 + $0x18] sm:$0xf]
          %v402 = vld [vmem:[%s328 + $0x1c] sm:$0xf]
          %v403 = vld [vmem:[%s328 + $0x20] sm:$0xf]
          %v404 = vld [vmem:[%s328 + $0x24] sm:$0xf]
          %v405 = vld [vmem:[%s328 + $0x28] sm:$0xf]
          %v406 = vld [vmem:[%s328 + $0x2c] sm:$0xf]
          %v407 = vld [vmem:[%s328 + $0x30] sm:$0xf]
          %v408 = vld [vmem:[%s328 + $0x34] sm:$0xf]
          %v409 = vld [vmem:[%s328 + $0x38] sm:$0xf]
          %v410 = vld [vmem:[%s328 + $0x3c] sm:$0xf]
          %v411 = vld [vmem:[%s328 + $0x40] sm:$0xf]
          %v412 = vld [vmem:[%s328 + $0x44] sm:$0xf]
          %v413 = vld [vmem:[%s328 + $0x48] sm:$0xf]
          %v414 = vld [vmem:[%s328 + $0x4c] sm:$0xf]
          %v415 = vld [vmem:[%s328 + $0x50] sm:$0xf]
          %v416 = vld [vmem:[%s328 + $0x54] sm:$0xf]
          %v417 = vld [vmem:[%s328 + $0x58] sm:$0xf]
          %v418 = vld [vmem:[%s328 + $0x5c] sm:$0xf]
          %v419 = vld [vmem:[%s328 + $0x60] sm:$0xf]
          %v420 = vld [vmem:[%s328 + $0x64] sm:$0xf]
          %v421 = vld [vmem:[%s328 + $0x68] sm:$0xf]
          %v422 = vld [vmem:[%s328 + $0x6c] sm:$0xf]
          %v423 = vld [vmem:[%s328 + $0x70] sm:$0xf]
          %v424 = vld [vmem:[%s328 + $0x74] sm:$0xf]
          %v425 = vld [vmem:[%s328 + $0x78] sm:$0xf]
          %v426 = vld [vmem:[%s328 + $0x7c] sm:$0xf]
          %v427 = vld [vmem:[%s328 + $0x80] sm:$0xf]
          %v428 = vld [vmem:[%s328 + $0x84] sm:$0xf]
          %v429 = vld [vmem:[%s328 + $0x88] sm:$0xf]
          %v430 = vld [vmem:[%s328 + $0x8c] sm:$0xf]
          %v431 = vld [vmem:[%s328 + $0x90] sm:$0xf]
          %v432 = vld [vmem:[%s328 + $0x94] sm:$0xf]
          %v433 = vld [vmem:[%s328 + $0x98] sm:$0xf]
          %v434 = vld [vmem:[%s328 + $0x9c] sm:$0xf]
          %v435 = vld [vmem:[%s328 + $0xa0] sm:$0xf]
          %v436 = vld [vmem:[%s328 + $0xa4] sm:$0xf]
          %v437 = vld [vmem:[%s328 + $0xa8] sm:$0xf]
          %v438 = vld [vmem:[%s328 + $0xac] sm:$0xf]
          %v439 = vld [vmem:[%s328 + $0xb0] sm:$0xf]
          %v440 = vld [vmem:[%s328 + $0xb4] sm:$0xf]
          %v441 = vld [vmem:[%s328 + $0xb8] sm:$0xf]
          %v442 = vld [vmem:[%s328 + $0xbc] sm:$0xf]
          %v443 = vld [vmem:[%s328 + $0xc0] sm:$0xf]
          %v444 = vld [vmem:[%s328 + $0xc4] sm:$0xf]
          %v445 = vld [vmem:[%s328 + $0xc8] sm:$0xf]
          %v446 = vld [vmem:[%s328 + $0xcc] sm:$0xf]
          %v447 = vld [vmem:[%s328 + $0xd0] sm:$0xf]
          %v448 = vld [vmem:[%s328 + $0xd4] sm:$0xf]
          %v449 = vld [vmem:[%s328 + $0xd8] sm:$0xf]
          %v450 = vld [vmem:[%s328 + $0xdc] sm:$0xf]
          %v451 = vld [vmem:[%s328 + $0xe0] sm:$0xf]
          %v452 = vld [vmem:[%s328 + $0xe4] sm:$0xf]
          %v453 = vld [vmem:[%s328 + $0xe8] sm:$0xf]
          %v454 = vld [vmem:[%s328 + $0xec] sm:$0xf]
          %v455 = vld [vmem:[%s328 + $0xf0] sm:$0xf]
          %v456 = vld [vmem:[%s328 + $0xf4] sm:$0xf]
          %v457 = vld [vmem:[%s328 + $0xf8] sm:$0xf]
          %v458 = vld [vmem:[%s328 + $0xfc] sm:$0xf]
          %v459 = vld [vmem:[%s337] sm:$0xf]
          %v460 = vld [vmem:[%s337 + $0x4] sm:$0xf]
          %v461 = vld [vmem:[%s337 + $0x8] sm:$0xf]
          %v462 = vld [vmem:[%s337 + $0xc] sm:$0xf]
          %v463 = vld [vmem:[%s337 + $0x10] sm:$0xf]
          %v464 = vld [vmem:[%s337 + $0x14] sm:$0xf]
          %v465 = vld [vmem:[%s337 + $0x18] sm:$0xf]
          %v466 = vld [vmem:[%s337 + $0x1c] sm:$0xf]
          %v467 = vld [vmem:[%s337 + $0x20] sm:$0xf]
          %v468 = vld [vmem:[%s337 + $0x24] sm:$0xf]
          %v469 = vld [vmem:[%s337 + $0x28] sm:$0xf]
          %v470 = vld [vmem:[%s337 + $0x2c] sm:$0xf]
          %v471 = vld [vmem:[%s337 + $0x30] sm:$0xf]
          %v472 = vld [vmem:[%s337 + $0x34] sm:$0xf]
          %v473 = vld [vmem:[%s337 + $0x38] sm:$0xf]
          %v474 = vld [vmem:[%s337 + $0x3c] sm:$0xf]
          %v539 = vunpack.c.l.b16 %v395
          %v540 = vunpack.c.l.b16 %v396
          %v541 = vunpack.c.l.b16 %v397
          %v542 = vunpack.c.l.b16 %v398
          %v543 = vunpack.c.l.b16 %v399
          %v544 = vunpack.c.l.b16 %v400
          %v545 = vunpack.c.l.b16 %v401
          %v546 = vunpack.c.l.b16 %v402
          %v547 = vunpack.c.l.b16 %v403
          %v548 = vunpack.c.l.b16 %v404
          %v549 = vunpack.c.l.b16 %v405
          %v550 = vunpack.c.l.b16 %v406
          %v551 = vunpack.c.l.b16 %v407
          %v552 = vunpack.c.l.b16 %v408
          %v553 = vunpack.c.l.b16 %v409
          %v554 = vunpack.c.l.b16 %v410
          %v555 = vunpack.c.l.b16 %v411
          %v556 = vunpack.c.l.b16 %v412
          %v557 = vunpack.c.l.b16 %v413
          %v558 = vunpack.c.l.b16 %v414
          %v559 = vunpack.c.l.b16 %v415
          %v560 = vunpack.c.l.b16 %v416
          %v561 = vunpack.c.l.b16 %v417
          %v562 = vunpack.c.l.b16 %v418
          %v563 = vunpack.c.l.b16 %v419
          %v564 = vunpack.c.l.b16 %v420
          %v565 = vunpack.c.l.b16 %v421
          %v566 = vunpack.c.l.b16 %v422
          %v567 = vunpack.c.l.b16 %v423
          %v568 = vunpack.c.l.b16 %v424
          %v569 = vunpack.c.l.b16 %v425
          %v570 = vunpack.c.l.b16 %v426
          %v571 = vunpack.c.l.b16 %v427
          %v572 = vunpack.c.l.b16 %v428
          %v573 = vunpack.c.l.b16 %v429
          %v574 = vunpack.c.l.b16 %v430
          %v575 = vunpack.c.l.b16 %v431
          %v576 = vunpack.c.l.b16 %v432
          %v577 = vunpack.c.l.b16 %v433
          %v578 = vunpack.c.l.b16 %v434
          %v579 = vunpack.c.l.b16 %v435
          %v580 = vunpack.c.l.b16 %v436
          %v581 = vunpack.c.l.b16 %v437
          %v582 = vunpack.c.l.b16 %v438
          %v583 = vunpack.c.l.b16 %v439
          %v584 = vunpack.c.l.b16 %v440
          %v585 = vunpack.c.l.b16 %v441
          %v586 = vunpack.c.l.b16 %v442
          %v587 = vunpack.c.l.b16 %v443
          %v588 = vunpack.c.l.b16 %v444
          %v589 = vunpack.c.l.b16 %v445
          %v590 = vunpack.c.l.b16 %v446
          %v591 = vunpack.c.l.b16 %v447
          %v592 = vunpack.c.l.b16 %v448
          %v593 = vunpack.c.l.b16 %v449
          %v594 = vunpack.c.l.b16 %v450
          %v595 = vunpack.c.l.b16 %v451
          %v596 = vunpack.c.l.b16 %v452
          %v597 = vunpack.c.l.b16 %v453
          %v598 = vunpack.c.l.b16 %v454
          %v599 = vunpack.c.l.b16 %v455
          %v600 = vunpack.c.l.b16 %v456
          %v601 = vunpack.c.l.b16 %v457
          %v602 = vunpack.c.l.b16 %v458
          %v603 = vpack.c.b16 %v540, %v539
          %v604 = vpack.c.b16 %v542, %v541
          %v605 = vpack.c.b16 %v544, %v543
          %v606 = vpack.c.b16 %v546, %v545
          %v607 = vpack.c.b16 %v548, %v547
          %v608 = vpack.c.b16 %v550, %v549
          %v609 = vpack.c.b16 %v552, %v551
          %v610 = vpack.c.b16 %v554, %v553
          %v611 = vpack.c.b16 %v556, %v555
          %v612 = vpack.c.b16 %v558, %v557
          %v613 = vpack.c.b16 %v560, %v559
          %v614 = vpack.c.b16 %v562, %v561
          %v615 = vpack.c.b16 %v564, %v563
          %v616 = vpack.c.b16 %v566, %v565
          %v617 = vpack.c.b16 %v568, %v567
          %v618 = vpack.c.b16 %v570, %v569
          %v619 = vpack.c.b16 %v572, %v571
          %v620 = vpack.c.b16 %v574, %v573
          %v621 = vpack.c.b16 %v576, %v575
          %v622 = vpack.c.b16 %v578, %v577
          %v623 = vpack.c.b16 %v580, %v579
          %v624 = vpack.c.b16 %v582, %v581
          %v625 = vpack.c.b16 %v584, %v583
          %v626 = vpack.c.b16 %v586, %v585
          %v627 = vpack.c.b16 %v588, %v587
          %v628 = vpack.c.b16 %v590, %v589
          %v629 = vpack.c.b16 %v592, %v591
          %v630 = vpack.c.b16 %v594, %v593
          %v631 = vpack.c.b16 %v596, %v595
          %v632 = vpack.c.b16 %v598, %v597
          %v633 = vpack.c.b16 %v600, %v599
          %v634 = vpack.c.b16 %v602, %v601
          %v683 = vunpack.c.l.b16 %v459
          %v684 = vunpack.c.l.b16 %v460
          %v685 = vunpack.c.l.b16 %v461
          %v686 = vunpack.c.l.b16 %v462
          %v687 = vunpack.c.l.b16 %v463
          %v688 = vunpack.c.l.b16 %v464
          %v689 = vunpack.c.l.b16 %v465
          %v690 = vunpack.c.l.b16 %v466
          %v691 = vunpack.c.l.b16 %v467
          %v692 = vunpack.c.l.b16 %v468
          %v693 = vunpack.c.l.b16 %v469
          %v694 = vunpack.c.l.b16 %v470
          %v695 = vunpack.c.l.b16 %v471
          %v696 = vunpack.c.l.b16 %v472
          %v697 = vunpack.c.l.b16 %v473
          %v698 = vunpack.c.l.b16 %v474
          %v699 = vpack.c.b16 %v684, %v683
          %v700 = vpack.c.b16 %v686, %v685
          %v701 = vpack.c.b16 %v688, %v687
          %v702 = vpack.c.b16 %v690, %v689
          %v703 = vpack.c.b16 %v692, %v691
          %v704 = vpack.c.b16 %v694, %v693
          %v705 = vpack.c.b16 %v696, %v695
          %v706 = vpack.c.b16 %v698, %v697
          %715 = vmatprep.subr.bf16.mxu0 0
          %716 = vmatpush1.bf16.msra.mxu0 %v699
          %717 = vmatprep.subr.bf16.mxu0 0
          %718 = vmatpush1.bf16.msra.mxu0 %v700
          %719 = vmatprep.subr.bf16.mxu0 0
          %720 = vmatpush1.bf16.msra.mxu0 %v701
          %721 = vmatprep.subr.bf16.mxu0 0
          %722 = vmatpush1.bf16.msra.mxu0 %v702
          %723 = vmatprep.subr.bf16.mxu0 0
          %724 = vmatpush1.bf16.msra.mxu0 %v703
          %725 = vmatprep.subr.bf16.mxu0 0
          %726 = vmatpush1.bf16.msra.mxu0 %v704
          %727 = vmatprep.subr.bf16.mxu0 0
          %728 = vmatpush1.bf16.msra.mxu0 %v705
          %729 = vmatprep.subr.bf16.mxu0 0
          %730 = vmatpush1.bf16.msra.mxu0 %v706
          %731 = vmatprep.subr.bf16.mxu0 0
          %732 = vmatpush1.bf16.msra.mxu0 0
          %733 = vmatprep.subr.bf16.mxu0 0
          %734 = vmatpush1.bf16.msra.mxu0 0
          %735 = vmatprep.subr.bf16.mxu0 0
          %736 = vmatpush1.bf16.msra.mxu0 0
          %737 = vmatprep.subr.bf16.mxu0 0
          %738 = vmatpush1.bf16.msra.mxu0 0
          %739 = vmatprep.subr.bf16.mxu0 0
          %740 = vmatpush1.bf16.msra.mxu0 0
          %741 = vmatprep.subr.bf16.mxu0 0
          %742 = vmatpush1.bf16.msra.mxu0 0
          %743 = vmatprep.subr.bf16.mxu0 0
          %744 = vmatpush1.bf16.msra.mxu0 0
          %745 = vmatprep.subr.bf16.mxu0 0
          %746 = vmatpush1.bf16.msra.mxu0 0
          %747 = vmatprep.mubr.bf16.mxu0 0
          %748 = vmatmul.mubr.bf16.gmra.mrb[0].mxu0 %v603
          %v749 = vpop.f32.mrb[0].mxu0
          %v750 = vadd.f32 0.0, %v749
          %v751 = vpop.f32.mrb[0].mxu0
          %v752 = vpop.f32.mrb[0].mxu0
          %v753 = vadd.f32 0.0, %v752
          %v754 = vpop.f32.mrb[0].mxu0
          %755 = vmatprep.mubr.bf16.mxu0 0
          %756 = vmatmul.mubr.bf16.gmra.mrb[0].mxu0 %v604
          %v757 = vpop.f32.mrb[0].mxu0
          %v758 = vadd.f32 0.0, %v757
          %v759 = vpop.f32.mrb[0].mxu0
          %v760 = vpop.f32.mrb[0].mxu0
          %v761 = vadd.f32 0.0, %v760
          %v762 = vpop.f32.mrb[0].mxu0
          %763 = vmatprep.mubr.bf16.mxu0 0
          %764 = vmatmul.mubr.bf16.gmra.mrb[0].mxu0 %v605
          %v765 = vpop.f32.mrb[0].mxu0
          %v766 = vadd.f32 0.0, %v765
          %v767 = vpop.f32.mrb[0].mxu0
          %v768 = vpop.f32.mrb[0].mxu0
          %v769 = vadd.f32 0.0, %v768
          %v770 = vpop.f32.mrb[0].mxu0
          %771 = vmatprep.mubr.bf16.mxu0 0
          %772 = vmatmul.mubr.bf16.gmra.mrb[0].mxu0 %v606
          %v773 = vpop.f32.mrb[0].mxu0
          %v774 = vadd.f32 0.0, %v773
          %v775 = vpop.f32.mrb[0].mxu0
          %v776 = vpop.f32.mrb[0].mxu0
          %v777 = vadd.f32 0.0, %v776
          %v778 = vpop.f32.mrb[0].mxu0
          %779 = vmatprep.mubr.bf16.mxu0 0
          %780 = vmatmul.mubr.bf16.gmra.mrb[0].mxu0 %v607
          %v781 = vpop.f32.mrb[0].mxu0
          %v782 = vadd.f32 0.0, %v781
          %v783 = vpop.f32.mrb[0].mxu0
          %v784 = vpop.f32.mrb[0].mxu0
          %v785 = vadd.f32 0.0, %v784
          %v786 = vpop.f32.mrb[0].mxu0
          %787 = vmatprep.mubr.bf16.mxu0 0
          %788 = vmatmul.mubr.bf16.gmra.mrb[0].mxu0 %v608
          %v789 = vpop.f32.mrb[0].mxu0
          %v790 = vadd.f32 0.0, %v789
          %v791 = vpop.f32.mrb[0].mxu0
          %v792 = vpop.f32.mrb[0].mxu0
          %v793 = vadd.f32 0.0, %v792
          %v794 = vpop.f32.mrb[0].mxu0
          %795 = vmatprep.mubr.bf16.mxu0 0
          %796 = vmatmul.mubr.bf16.gmra.mrb[0].mxu0 %v609
          %v797 = vpop.f32.mrb[0].mxu0
          %v798 = vadd.f32 0.0, %v797
          %v799 = vpop.f32.mrb[0].mxu0
          %v800 = vpop.f32.mrb[0].mxu0
          %v801 = vadd.f32 0.0, %v800
          %v802 = vpop.f32.mrb[0].mxu0
          %803 = vmatprep.mubr.bf16.mxu0 0
          %804 = vmatmul.mubr.bf16.gmra.mrb[0].mxu0 %v610
          %v805 = vpop.f32.mrb[0].mxu0
          %v806 = vadd.f32 0.0, %v805
          %v807 = vpop.f32.mrb[0].mxu0
          %v808 = vpop.f32.mrb[0].mxu0
          %v809 = vadd.f32 0.0, %v808
          %v810 = vpop.f32.mrb[0].mxu0
          %811 = vmatprep.mubr.bf16.mxu0 0
          %812 = vmatmul.mubr.bf16.gmra.mrb[0].mxu0 %v611
          %v813 = vpop.f32.mrb[0].mxu0
          %v814 = vadd.f32 0.0, %v813
          %v815 = vpop.f32.mrb[0].mxu0
          %v816 = vpop.f32.mrb[0].mxu0
          %v817 = vadd.f32 0.0, %v816
          %v818 = vpop.f32.mrb[0].mxu0
          %819 = vmatprep.mubr.bf16.mxu0 0
          %820 = vmatmul.mubr.bf16.gmra.mrb[0].mxu0 %v612
          %v821 = vpop.f32.mrb[0].mxu0
          %v822 = vadd.f32 0.0, %v821
          %v823 = vpop.f32.mrb[0].mxu0
          %v824 = vpop.f32.mrb[0].mxu0
          %v825 = vadd.f32 0.0, %v824
          %v826 = vpop.f32.mrb[0].mxu0
          %827 = vmatprep.mubr.bf16.mxu0 0
          %828 = vmatmul.mubr.bf16.gmra.mrb[0].mxu0 %v613
          %v829 = vpop.f32.mrb[0].mxu0
          %v830 = vadd.f32 0.0, %v829
          %v831 = vpop.f32.mrb[0].mxu0
          %v832 = vpop.f32.mrb[0].mxu0
          %v833 = vadd.f32 0.0, %v832
          %v834 = vpop.f32.mrb[0].mxu0
          %835 = vmatprep.mubr.bf16.mxu0 0
          %836 = vmatmul.mubr.bf16.gmra.mrb[0].mxu0 %v614
          %v837 = vpop.f32.mrb[0].mxu0
          %v838 = vadd.f32 0.0, %v837
          %v839 = vpop.f32.mrb[0].mxu0
          %v840 = vpop.f32.mrb[0].mxu0
          %v841 = vadd.f32 0.0, %v840
          %v842 = vpop.f32.mrb[0].mxu0
          %843 = vmatprep.mubr.bf16.mxu0 0
          %844 = vmatmul.mubr.bf16.gmra.mrb[0].mxu0 %v615
          %v845 = vpop.f32.mrb[0].mxu0
          %v846 = vadd.f32 0.0, %v845
          %v847 = vpop.f32.mrb[0].mxu0
          %v848 = vpop.f32.mrb[0].mxu0
          %v849 = vadd.f32 0.0, %v848
          %v850 = vpop.f32.mrb[0].mxu0
          %851 = vmatprep.mubr.bf16.mxu0 0
          %852 = vmatmul.mubr.bf16.gmra.mrb[0].mxu0 %v616
          %v853 = vpop.f32.mrb[0].mxu0
          %v854 = vadd.f32 0.0, %v853
          %v855 = vpop.f32.mrb[0].mxu0
          %v856 = vpop.f32.mrb[0].mxu0
          %v857 = vadd.f32 0.0, %v856
          %v858 = vpop.f32.mrb[0].mxu0
          %859 = vmatprep.mubr.bf16.mxu0 0
          %860 = vmatmul.mubr.bf16.gmra.mrb[0].mxu0 %v617
          %v861 = vpop.f32.mrb[0].mxu0
          %v862 = vadd.f32 0.0, %v861
          %v863 = vpop.f32.mrb[0].mxu0
          %v864 = vpop.f32.mrb[0].mxu0
          %v865 = vadd.f32 0.0, %v864
          %v866 = vpop.f32.mrb[0].mxu0
          %867 = vmatprep.mubr.bf16.mxu0 0
          %868 = vmatmul.mubr.bf16.gmra.mrb[0].mxu0 %v618
          %v869 = vpop.f32.mrb[0].mxu0
          %v870 = vadd.f32 0.0, %v869
          %v871 = vpop.f32.mrb[0].mxu0
          %v872 = vpop.f32.mrb[0].mxu0
          %v873 = vadd.f32 0.0, %v872
          %v874 = vpop.f32.mrb[0].mxu0
          %875 = vmatprep.mubr.bf16.mxu0 0
          %876 = vmatmul.mubr.bf16.gmra.mrb[0].mxu0 %v619
          %v877 = vpop.f32.mrb[0].mxu0
          %v878 = vadd.f32 0.0, %v877
          %v879 = vpop.f32.mrb[0].mxu0
          %v880 = vpop.f32.mrb[0].mxu0
          %v881 = vadd.f32 0.0, %v880
          %v882 = vpop.f32.mrb[0].mxu0
          %883 = vmatprep.mubr.bf16.mxu0 0
          %884 = vmatmul.mubr.bf16.gmra.mrb[0].mxu0 %v620
          %v885 = vpop.f32.mrb[0].mxu0
          %v886 = vadd.f32 0.0, %v885
          %v887 = vpop.f32.mrb[0].mxu0
          %v888 = vpop.f32.mrb[0].mxu0
          %v889 = vadd.f32 0.0, %v888
          %v890 = vpop.f32.mrb[0].mxu0
          %891 = vmatprep.mubr.bf16.mxu0 0
          %892 = vmatmul.mubr.bf16.gmra.mrb[0].mxu0 %v621
          %v893 = vpop.f32.mrb[0].mxu0
          %v894 = vadd.f32 0.0, %v893
          %v895 = vpop.f32.mrb[0].mxu0
          %v896 = vpop.f32.mrb[0].mxu0
          %v897 = vadd.f32 0.0, %v896
          %v898 = vpop.f32.mrb[0].mxu0
          %899 = vmatprep.mubr.bf16.mxu0 0
          %900 = vmatmul.mubr.bf16.gmra.mrb[0].mxu0 %v622
          %v901 = vpop.f32.mrb[0].mxu0
          %v902 = vadd.f32 0.0, %v901
          %v903 = vpop.f32.mrb[0].mxu0
          %v904 = vpop.f32.mrb[0].mxu0
          %v905 = vadd.f32 0.0, %v904
          %v906 = vpop.f32.mrb[0].mxu0
          %907 = vmatprep.mubr.bf16.mxu0 0
          %908 = vmatmul.mubr.bf16.gmra.mrb[0].mxu0 %v623
          %v909 = vpop.f32.mrb[0].mxu0
          %v910 = vadd.f32 0.0, %v909
          %v911 = vpop.f32.mrb[0].mxu0
          %v912 = vpop.f32.mrb[0].mxu0
          %v913 = vadd.f32 0.0, %v912
          %v914 = vpop.f32.mrb[0].mxu0
          %915 = vmatprep.mubr.bf16.mxu0 0
          %916 = vmatmul.mubr.bf16.gmra.mrb[0].mxu0 %v624
          %v917 = vpop.f32.mrb[0].mxu0
          %v918 = vadd.f32 0.0, %v917
          %v919 = vpop.f32.mrb[0].mxu0
          %v920 = vpop.f32.mrb[0].mxu0
          %v921 = vadd.f32 0.0, %v920
          %v922 = vpop.f32.mrb[0].mxu0
          %923 = vmatprep.mubr.bf16.mxu0 0
          %924 = vmatmul.mubr.bf16.gmra.mrb[0].mxu0 %v625
          %v925 = vpop.f32.mrb[0].mxu0
          %v926 = vadd.f32 0.0, %v925
          %v927 = vpop.f32.mrb[0].mxu0
          %v928 = vpop.f32.mrb[0].mxu0
          %v929 = vadd.f32 0.0, %v928
          %v930 = vpop.f32.mrb[0].mxu0
          %931 = vmatprep.mubr.bf16.mxu0 0
          %932 = vmatmul.mubr.bf16.gmra.mrb[0].mxu0 %v626
          %v933 = vpop.f32.mrb[0].mxu0
          %v934 = vadd.f32 0.0, %v933
          %v935 = vpop.f32.mrb[0].mxu0
          %v936 = vpop.f32.mrb[0].mxu0
          %v937 = vadd.f32 0.0, %v936
          %v938 = vpop.f32.mrb[0].mxu0
          %939 = vmatprep.mubr.bf16.mxu0 0
          %940 = vmatmul.mubr.bf16.gmra.mrb[0].mxu0 %v627
          %v941 = vpop.f32.mrb[0].mxu0
          %v942 = vadd.f32 0.0, %v941
          %v943 = vpop.f32.mrb[0].mxu0
          %v944 = vpop.f32.mrb[0].mxu0
          %v945 = vadd.f32 0.0, %v944
          %v946 = vpop.f32.mrb[0].mxu0
          %947 = vmatprep.mubr.bf16.mxu0 0
          %948 = vmatmul.mubr.bf16.gmra.mrb[0].mxu0 %v628
          %v949 = vpop.f32.mrb[0].mxu0
          %v950 = vadd.f32 0.0, %v949
          %v951 = vpop.f32.mrb[0].mxu0
          %v952 = vpop.f32.mrb[0].mxu0
          %v953 = vadd.f32 0.0, %v952
          %v954 = vpop.f32.mrb[0].mxu0
          %955 = vmatprep.mubr.bf16.mxu0 0
          %956 = vmatmul.mubr.bf16.gmra.mrb[0].mxu0 %v629
          %v957 = vpop.f32.mrb[0].mxu0
          %v958 = vadd.f32 0.0, %v957
          %v959 = vpop.f32.mrb[0].mxu0
          %v960 = vpop.f32.mrb[0].mxu0
          %v961 = vadd.f32 0.0, %v960
          %v962 = vpop.f32.mrb[0].mxu0
          %963 = vmatprep.mubr.bf16.mxu0 0
          %964 = vmatmul.mubr.bf16.gmra.mrb[0].mxu0 %v630
          %v965 = vpop.f32.mrb[0].mxu0
          %v966 = vadd.f32 0.0, %v965
          %v967 = vpop.f32.mrb[0].mxu0
          %v968 = vpop.f32.mrb[0].mxu0
          %v969 = vadd.f32 0.0, %v968
          %v970 = vpop.f32.mrb[0].mxu0
          %971 = vmatprep.mubr.bf16.mxu0 0
          %972 = vmatmul.mubr.bf16.gmra.mrb[0].mxu0 %v631
          %v973 = vpop.f32.mrb[0].mxu0
          %v974 = vadd.f32 0.0, %v973
          %v975 = vpop.f32.mrb[0].mxu0
          %v976 = vpop.f32.mrb[0].mxu0
          %v977 = vadd.f32 0.0, %v976
          %v978 = vpop.f32.mrb[0].mxu0
          %979 = vmatprep.mubr.bf16.mxu0 0
          %980 = vmatmul.mubr.bf16.gmra.mrb[0].mxu0 %v632
          %v981 = vpop.f32.mrb[0].mxu0
          %v982 = vadd.f32 0.0, %v981
          %v983 = vpop.f32.mrb[0].mxu0
          %v984 = vpop.f32.mrb[0].mxu0
          %v985 = vadd.f32 0.0, %v984
          %v986 = vpop.f32.mrb[0].mxu0
          %987 = vmatprep.mubr.bf16.mxu0 0
          %988 = vmatmul.mubr.bf16.gmra.mrb[0].mxu0 %v633
          %v989 = vpop.f32.mrb[0].mxu0
          %v990 = vadd.f32 0.0, %v989
          %v991 = vpop.f32.mrb[0].mxu0
          %v992 = vpop.f32.mrb[0].mxu0
          %v993 = vadd.f32 0.0, %v992
          %v994 = vpop.f32.mrb[0].mxu0
          %995 = vmatprep.mubr.bf16.mxu0 0
          %996 = vmatmul.mubr.bf16.gmra.mrb[0].mxu0 %v634
          %v997 = vpop.f32.mrb[0].mxu0
          %v998 = vadd.f32 0.0, %v997
          %v999 = vpop.f32.mrb[0].mxu0
          %v1000 = vpop.f32.mrb[0].mxu0
          %v1001 = vadd.f32 0.0, %v1000
          %v1002 = vpop.f32.mrb[0].mxu0
          %1003 = vdwg.mxu0
          %v1004 = vpack.c.bf16 %v753, %v750
          %v1005 = vpack.c.bf16 %v761, %v758
          %v1006 = vpack.c.bf16 %v769, %v766
          %v1007 = vpack.c.bf16 %v777, %v774
          %v1008 = vpack.c.bf16 %v785, %v782
          %v1009 = vpack.c.bf16 %v793, %v790
          %v1010 = vpack.c.bf16 %v801, %v798
          %v1011 = vpack.c.bf16 %v809, %v806
          %v1012 = vpack.c.bf16 %v817, %v814
          %v1013 = vpack.c.bf16 %v825, %v822
          %v1014 = vpack.c.bf16 %v833, %v830
          %v1015 = vpack.c.bf16 %v841, %v838
          %v1016 = vpack.c.bf16 %v849, %v846
          %v1017 = vpack.c.bf16 %v857, %v854
          %v1018 = vpack.c.bf16 %v865, %v862
          %v1019 = vpack.c.bf16 %v873, %v870
          %v1020 = vpack.c.bf16 %v881, %v878
          %v1021 = vpack.c.bf16 %v889, %v886
          %v1022 = vpack.c.bf16 %v897, %v894
          %v1023 = vpack.c.bf16 %v905, %v902
          %v1024 = vpack.c.bf16 %v913, %v910
          %v1025 = vpack.c.bf16 %v921, %v918
          %v1026 = vpack.c.bf16 %v929, %v926
          %v1027 = vpack.c.bf16 %v937, %v934
          %v1028 = vpack.c.bf16 %v945, %v942
          %v1029 = vpack.c.bf16 %v953, %v950
          %v1030 = vpack.c.bf16 %v961, %v958
          %v1031 = vpack.c.bf16 %v969, %v966
          %v1032 = vpack.c.bf16 %v977, %v974
          %v1033 = vpack.c.bf16 %v985, %v982
          %v1034 = vpack.c.bf16 %v993, %v990
          %v1035 = vpack.c.bf16 %v1001, %v998
          %s1036 = sshra.s32 %s388, 4
          %s1037 = sand.u32 %s388, 15
          %s1038 = smul.addr %s1036, 8
          %s1039 = scalar_lea.vmem [#allocation3], %s1038
          %1040 = vst [vmem:[%s1039] sm:$0xff] %v1004
          %1041 = vst [vmem:[%s1039 + $0x8] sm:$0xff] %v1005
          %1042 = vst [vmem:[%s1039 + $0x10] sm:$0xff] %v1006
          %1043 = vst [vmem:[%s1039 + $0x18] sm:$0xff] %v1007
          %1044 = vst [vmem:[%s1039 + $0x20] sm:$0xff] %v1008
          %1045 = vst [vmem:[%s1039 + $0x28] sm:$0xff] %v1009
          %1046 = vst [vmem:[%s1039 + $0x30] sm:$0xff] %v1010
          %1047 = vst [vmem:[%s1039 + $0x38] sm:$0xff] %v1011
          %1048 = vst [vmem:[%s1039 + $0x40] sm:$0xff] %v1012
          %1049 = vst [vmem:[%s1039 + $0x48] sm:$0xff] %v1013
          %1050 = vst [vmem:[%s1039 + $0x50] sm:$0xff] %v1014
          %1051 = vst [vmem:[%s1039 + $0x58] sm:$0xff] %v1015
          %1052 = vst [vmem:[%s1039 + $0x60] sm:$0xff] %v1016
          %1053 = vst [vmem:[%s1039 + $0x68] sm:$0xff] %v1017
          %1054 = vst [vmem:[%s1039 + $0x70] sm:$0xff] %v1018
          %1055 = vst [vmem:[%s1039 + $0x78] sm:$0xff] %v1019
          %1056 = vst [vmem:[%s1039 + $0x80] sm:$0xff] %v1020
          %1057 = vst [vmem:[%s1039 + $0x88] sm:$0xff] %v1021
          %1058 = vst [vmem:[%s1039 + $0x90] sm:$0xff] %v1022
          %1059 = vst [vmem:[%s1039 + $0x98] sm:$0xff] %v1023
          %1060 = vst [vmem:[%s1039 + $0xa0] sm:$0xff] %v1024
          %1061 = vst [vmem:[%s1039 + $0xa8] sm:$0xff] %v1025
          %1062 = vst [vmem:[%s1039 + $0xb0] sm:$0xff] %v1026
          %1063 = vst [vmem:[%s1039 + $0xb8] sm:$0xff] %v1027
          %1064 = vst [vmem:[%s1039 + $0xc0] sm:$0xff] %v1028
          %1065 = vst [vmem:[%s1039 + $0xc8] sm:$0xff] %v1029
          %1066 = vst [vmem:[%s1039 + $0xd0] sm:$0xff] %v1030
          %1067 = vst [vmem:[%s1039 + $0xd8] sm:$0xff] %v1031
          %1068 = vst [vmem:[%s1039 + $0xe0] sm:$0xff] %v1032
          %1069 = vst [vmem:[%s1039 + $0xe8] sm:$0xff] %v1033
          %1070 = vst [vmem:[%s1039 + $0xf0] sm:$0xff] %v1034
          %1071 = vst [vmem:[%s1039 + $0xf8] sm:$0xff] %v1035
        $region60: #{tpu_custom_call.1} parent=39 // pred_fallthru
          _
        %p1072 = scmp.gt.s32.totalorder %s31, 0
        %p1073 = pnand %p389, %p1072
        %p1074 = pneg %p1073
        // Predicated region
        $region61: #{tpu_custom_call.1} parent=39 // pred_check
          _
        $region62: #{tpu_custom_call.1} parent=39 // pred_check_branch
          %1076 = sbr.rel (%p1073) target = $region64
        $region63: #{tpu_custom_call.1} parent=39 // pred_region
          %s1077 = sshra.s32 %s388, 4
          %s1078 = sand.u32 %s388, 15
          %s1079 = smul.addr %s1077, 8
          %s1080 = scalar_lea.vmem [#allocation2], %s1079
          %v1081 = vld [vmem:[%s1080] sm:$0xff]
          %v1082 = vld [vmem:[%s1080 + $0x8] sm:$0xff]
          %v1083 = vld [vmem:[%s1080 + $0x10] sm:$0xff]
          %v1084 = vld [vmem:[%s1080 + $0x18] sm:$0xff]
          %v1085 = vld [vmem:[%s1080 + $0x20] sm:$0xff]
          %v1086 = vld [vmem:[%s1080 + $0x28] sm:$0xff]
          %v1087 = vld [vmem:[%s1080 + $0x30] sm:$0xff]
          %v1088 = vld [vmem:[%s1080 + $0x38] sm:$0xff]
          %v1089 = vld [vmem:[%s1080 + $0x40] sm:$0xff]
          %v1090 = vld [vmem:[%s1080 + $0x48] sm:$0xff]
          %v1091 = vld [vmem:[%s1080 + $0x50] sm:$0xff]
          %v1092 = vld [vmem:[%s1080 + $0x58] sm:$0xff]
          %v1093 = vld [vmem:[%s1080 + $0x60] sm:$0xff]
          %v1094 = vld [vmem:[%s1080 + $0x68] sm:$0xff]
          %v1095 = vld [vmem:[%s1080 + $0x70] sm:$0xff]
          %v1096 = vld [vmem:[%s1080 + $0x78] sm:$0xff]
          %v1097 = vld [vmem:[%s1080 + $0x80] sm:$0xff]
          %v1098 = vld [vmem:[%s1080 + $0x88] sm:$0xff]
          %v1099 = vld [vmem:[%s1080 + $0x90] sm:$0xff]
          %v1100 = vld [vmem:[%s1080 + $0x98] sm:$0xff]
          %v1101 = vld [vmem:[%s1080 + $0xa0] sm:$0xff]
          %v1102 = vld [vmem:[%s1080 + $0xa8] sm:$0xff]
          %v1103 = vld [vmem:[%s1080 + $0xb0] sm:$0xff]
          %v1104 = vld [vmem:[%s1080 + $0xb8] sm:$0xff]
          %v1105 = vld [vmem:[%s1080 + $0xc0] sm:$0xff]
          %v1106 = vld [vmem:[%s1080 + $0xc8] sm:$0xff]
          %v1107 = vld [vmem:[%s1080 + $0xd0] sm:$0xff]
          %v1108 = vld [vmem:[%s1080 + $0xd8] sm:$0xff]
          %v1109 = vld [vmem:[%s1080 + $0xe0] sm:$0xff]
          %v1110 = vld [vmem:[%s1080 + $0xe8] sm:$0xff]
          %v1111 = vld [vmem:[%s1080 + $0xf0] sm:$0xff]
          %v1112 = vld [vmem:[%s1080 + $0xf8] sm:$0xff]
          %v1113 = vld [vmem:[%s337] sm:$0xf]
          %v1114 = vld [vmem:[%s337 + $0x4] sm:$0xf]
          %v1115 = vld [vmem:[%s337 + $0x8] sm:$0xf]
          %v1116 = vld [vmem:[%s337 + $0xc] sm:$0xf]
          %v1117 = vld [vmem:[%s337 + $0x10] sm:$0xf]
          %v1118 = vld [vmem:[%s337 + $0x14] sm:$0xf]
          %v1119 = vld [vmem:[%s337 + $0x18] sm:$0xf]
          %v1120 = vld [vmem:[%s337 + $0x1c] sm:$0xf]
          %v1121 = vld [vmem:[%s337 + $0x20] sm:$0xf]
          %v1122 = vld [vmem:[%s337 + $0x24] sm:$0xf]
          %v1123 = vld [vmem:[%s337 + $0x28] sm:$0xf]
          %v1124 = vld [vmem:[%s337 + $0x2c] sm:$0xf]
          %v1125 = vld [vmem:[%s337 + $0x30] sm:$0xf]
          %v1126 = vld [vmem:[%s337 + $0x34] sm:$0xf]
          %v1127 = vld [vmem:[%s337 + $0x38] sm:$0xf]
          %v1128 = vld [vmem:[%s337 + $0x3c] sm:$0xf]
          %v1145 = vunpack.c.l.b16 %v1113
          %v1146 = vunpack.c.l.b16 %v1114
          %v1147 = vunpack.c.l.b16 %v1115
          %v1148 = vunpack.c.l.b16 %v1116
          %v1149 = vunpack.c.l.b16 %v1117
          %v1150 = vunpack.c.l.b16 %v1118
          %v1151 = vunpack.c.l.b16 %v1119
          %v1152 = vunpack.c.l.b16 %v1120
          %v1153 = vunpack.c.l.b16 %v1121
          %v1154 = vunpack.c.l.b16 %v1122
          %v1155 = vunpack.c.l.b16 %v1123
          %v1156 = vunpack.c.l.b16 %v1124
          %v1157 = vunpack.c.l.b16 %v1125
          %v1158 = vunpack.c.l.b16 %v1126
          %v1159 = vunpack.c.l.b16 %v1127
          %v1160 = vunpack.c.l.b16 %v1128
          %v1161 = vpack.c.b16 %v1146, %v1145
          %v1162 = vpack.c.b16 %v1148, %v1147
          %v1163 = vpack.c.b16 %v1150, %v1149
          %v1164 = vpack.c.b16 %v1152, %v1151
          %v1165 = vpack.c.b16 %v1154, %v1153
          %v1166 = vpack.c.b16 %v1156, %v1155
          %v1167 = vpack.c.b16 %v1158, %v1157
          %v1168 = vpack.c.b16 %v1160, %v1159
          %1177 = vmatprep.subr.bf16.mxu0 0
          %1178 = vmatpush1.bf16.msra.mxu0 %v1161
          %1179 = vmatprep.subr.bf16.mxu0 0
          %1180 = vmatpush1.bf16.msra.mxu0 %v1162
          %1181 = vmatprep.subr.bf16.mxu0 0
          %1182 = vmatpush1.bf16.msra.mxu0 %v1163
          %1183 = vmatprep.subr.bf16.mxu0 0
          %1184 = vmatpush1.bf16.msra.mxu0 %v1164
          %1185 = vmatprep.subr.bf16.mxu0 0
          %1186 = vmatpush1.bf16.msra.mxu0 %v1165
          %1187 = vmatprep.subr.bf16.mxu0 0
          %1188 = vmatpush1.bf16.msra.mxu0 %v1166
          %1189 = vmatprep.subr.bf16.mxu0 0
          %1190 = vmatpush1.bf16.msra.mxu0 %v1167
          %1191 = vmatprep.subr.bf16.mxu0 0
          %1192 = vmatpush1.bf16.msra.mxu0 %v1168
          %1193 = vmatprep.subr.bf16.mxu0 0
          %1194 = vmatpush1.bf16.msra.mxu0 0
          %1195 = vmatprep.subr.bf16.mxu0 0
          %1196 = vmatpush1.bf16.msra.mxu0 0
          %1197 = vmatprep.subr.bf16.mxu0 0
          %1198 = vmatpush1.bf16.msra.mxu0 0
          %1199 = vmatprep.subr.bf16.mxu0 0
          %1200 = vmatpush1.bf16.msra.mxu0 0
          %1201 = vmatprep.subr.bf16.mxu0 0
          %1202 = vmatpush1.bf16.msra.mxu0 0
          %1203 = vmatprep.subr.bf16.mxu0 0
          %1204 = vmatpush1.bf16.msra.mxu0 0
          %1205 = vmatprep.subr.bf16.mxu0 0
          %1206 = vmatpush1.bf16.msra.mxu0 0
          %1207 = vmatprep.subr.bf16.mxu0 0
          %1208 = vmatpush1.bf16.msra.mxu0 0
          %1209 = vmatprep.mubr.bf16.mxu0 0
          %1210 = vmatmul.mubr.bf16.gmra.mrb[0].mxu0 %v1081
          %v1211 = vpop.f32.mrb[0].mxu0
          %v1212 = vadd.f32 0.0, %v1211
          %v1213 = vpop.f32.mrb[0].mxu0
          %v1214 = vpop.f32.mrb[0].mxu0
          %v1215 = vadd.f32 0.0, %v1214
          %v1216 = vpop.f32.mrb[0].mxu0
          %1217 = vmatprep.mubr.bf16.mxu0 0
          %1218 = vmatmul.mubr.bf16.gmra.mrb[0].mxu0 %v1082
          %v1219 = vpop.f32.mrb[0].mxu0
          %v1220 = vadd.f32 0.0, %v1219
          %v1221 = vpop.f32.mrb[0].mxu0
          %v1222 = vpop.f32.mrb[0].mxu0
          %v1223 = vadd.f32 0.0, %v1222
          %v1224 = vpop.f32.mrb[0].mxu0
          %1225 = vmatprep.mubr.bf16.mxu0 0
          %1226 = vmatmul.mubr.bf16.gmra.mrb[0].mxu0 %v1083
          %v1227 = vpop.f32.mrb[0].mxu0
          %v1228 = vadd.f32 0.0, %v1227
          %v1229 = vpop.f32.mrb[0].mxu0
          %v1230 = vpop.f32.mrb[0].mxu0
          %v1231 = vadd.f32 0.0, %v1230
          %v1232 = vpop.f32.mrb[0].mxu0
          %1233 = vmatprep.mubr.bf16.mxu0 0
          %1234 = vmatmul.mubr.bf16.gmra.mrb[0].mxu0 %v1084
          %v1235 = vpop.f32.mrb[0].mxu0
          %v1236 = vadd.f32 0.0, %v1235
          %v1237 = vpop.f32.mrb[0].mxu0
          %v1238 = vpop.f32.mrb[0].mxu0
          %v1239 = vadd.f32 0.0, %v1238
          %v1240 = vpop.f32.mrb[0].mxu0
          %1241 = vmatprep.mubr.bf16.mxu0 0
          %1242 = vmatmul.mubr.bf16.gmra.mrb[0].mxu0 %v1085
          %v1243 = vpop.f32.mrb[0].mxu0
          %v1244 = vadd.f32 0.0, %v1243
          %v1245 = vpop.f32.mrb[0].mxu0
          %v1246 = vpop.f32.mrb[0].mxu0
          %v1247 = vadd.f32 0.0, %v1246
          %v1248 = vpop.f32.mrb[0].mxu0
          %1249 = vmatprep.mubr.bf16.mxu0 0
          %1250 = vmatmul.mubr.bf16.gmra.mrb[0].mxu0 %v1086
          %v1251 = vpop.f32.mrb[0].mxu0
          %v1252 = vadd.f32 0.0, %v1251
          %v1253 = vpop.f32.mrb[0].mxu0
          %v1254 = vpop.f32.mrb[0].mxu0
          %v1255 = vadd.f32 0.0, %v1254
          %v1256 = vpop.f32.mrb[0].mxu0
          %1257 = vmatprep.mubr.bf16.mxu0 0
          %1258 = vmatmul.mubr.bf16.gmra.mrb[0].mxu0 %v1087
          %v1259 = vpop.f32.mrb[0].mxu0
          %v1260 = vadd.f32 0.0, %v1259
          %v1261 = vpop.f32.mrb[0].mxu0
          %v1262 = vpop.f32.mrb[0].mxu0
          %v1263 = vadd.f32 0.0, %v1262
          %v1264 = vpop.f32.mrb[0].mxu0
          %1265 = vmatprep.mubr.bf16.mxu0 0
          %1266 = vmatmul.mubr.bf16.gmra.mrb[0].mxu0 %v1088
          %v1267 = vpop.f32.mrb[0].mxu0
          %v1268 = vadd.f32 0.0, %v1267
          %v1269 = vpop.f32.mrb[0].mxu0
          %v1270 = vpop.f32.mrb[0].mxu0
          %v1271 = vadd.f32 0.0, %v1270
          %v1272 = vpop.f32.mrb[0].mxu0
          %1273 = vmatprep.mubr.bf16.mxu0 0
          %1274 = vmatmul.mubr.bf16.gmra.mrb[0].mxu0 %v1089
          %v1275 = vpop.f32.mrb[0].mxu0
          %v1276 = vadd.f32 0.0, %v1275
          %v1277 = vpop.f32.mrb[0].mxu0
          %v1278 = vpop.f32.mrb[0].mxu0
          %v1279 = vadd.f32 0.0, %v1278
          %v1280 = vpop.f32.mrb[0].mxu0
          %1281 = vmatprep.mubr.bf16.mxu0 0
          %1282 = vmatmul.mubr.bf16.gmra.mrb[0].mxu0 %v1090
          %v1283 = vpop.f32.mrb[0].mxu0
          %v1284 = vadd.f32 0.0, %v1283
          %v1285 = vpop.f32.mrb[0].mxu0
          %v1286 = vpop.f32.mrb[0].mxu0
          %v1287 = vadd.f32 0.0, %v1286
          %v1288 = vpop.f32.mrb[0].mxu0
          %1289 = vmatprep.mubr.bf16.mxu0 0
          %1290 = vmatmul.mubr.bf16.gmra.mrb[0].mxu0 %v1091
          %v1291 = vpop.f32.mrb[0].mxu0
          %v1292 = vadd.f32 0.0, %v1291
          %v1293 = vpop.f32.mrb[0].mxu0
          %v1294 = vpop.f32.mrb[0].mxu0
          %v1295 = vadd.f32 0.0, %v1294
          %v1296 = vpop.f32.mrb[0].mxu0
          %1297 = vmatprep.mubr.bf16.mxu0 0
          %1298 = vmatmul.mubr.bf16.gmra.mrb[0].mxu0 %v1092
          %v1299 = vpop.f32.mrb[0].mxu0
          %v1300 = vadd.f32 0.0, %v1299
          %v1301 = vpop.f32.mrb[0].mxu0
          %v1302 = vpop.f32.mrb[0].mxu0
          %v1303 = vadd.f32 0.0, %v1302
          %v1304 = vpop.f32.mrb[0].mxu0
          %1305 = vmatprep.mubr.bf16.mxu0 0
          %1306 = vmatmul.mubr.bf16.gmra.mrb[0].mxu0 %v1093
          %v1307 = vpop.f32.mrb[0].mxu0
          %v1308 = vadd.f32 0.0, %v1307
          %v1309 = vpop.f32.mrb[0].mxu0
          %v1310 = vpop.f32.mrb[0].mxu0
          %v1311 = vadd.f32 0.0, %v1310
          %v1312 = vpop.f32.mrb[0].mxu0
          %1313 = vmatprep.mubr.bf16.mxu0 0
          %1314 = vmatmul.mubr.bf16.gmra.mrb[0].mxu0 %v1094
          %v1315 = vpop.f32.mrb[0].mxu0
          %v1316 = vadd.f32 0.0, %v1315
          %v1317 = vpop.f32.mrb[0].mxu0
          %v1318 = vpop.f32.mrb[0].mxu0
          %v1319 = vadd.f32 0.0, %v1318
          %v1320 = vpop.f32.mrb[0].mxu0
          %1321 = vmatprep.mubr.bf16.mxu0 0
          %1322 = vmatmul.mubr.bf16.gmra.mrb[0].mxu0 %v1095
          %v1323 = vpop.f32.mrb[0].mxu0
          %v1324 = vadd.f32 0.0, %v1323
          %v1325 = vpop.f32.mrb[0].mxu0
          %v1326 = vpop.f32.mrb[0].mxu0
          %v1327 = vadd.f32 0.0, %v1326
          %v1328 = vpop.f32.mrb[0].mxu0
          %1329 = vmatprep.mubr.bf16.mxu0 0
          %1330 = vmatmul.mubr.bf16.gmra.mrb[0].mxu0 %v1096
          %v1331 = vpop.f32.mrb[0].mxu0
          %v1332 = vadd.f32 0.0, %v1331
          %v1333 = vpop.f32.mrb[0].mxu0
          %v1334 = vpop.f32.mrb[0].mxu0
          %v1335 = vadd.f32 0.0, %v1334
          %v1336 = vpop.f32.mrb[0].mxu0
          %1337 = vmatprep.mubr.bf16.mxu0 0
          %1338 = vmatmul.mubr.bf16.gmra.mrb[0].mxu0 %v1097
          %v1339 = vpop.f32.mrb[0].mxu0
          %v1340 = vadd.f32 0.0, %v1339
          %v1341 = vpop.f32.mrb[0].mxu0
          %v1342 = vpop.f32.mrb[0].mxu0
          %v1343 = vadd.f32 0.0, %v1342
          %v1344 = vpop.f32.mrb[0].mxu0
          %1345 = vmatprep.mubr.bf16.mxu0 0
          %1346 = vmatmul.mubr.bf16.gmra.mrb[0].mxu0 %v1098
          %v1347 = vpop.f32.mrb[0].mxu0
          %v1348 = vadd.f32 0.0, %v1347
          %v1349 = vpop.f32.mrb[0].mxu0
          %v1350 = vpop.f32.mrb[0].mxu0
          %v1351 = vadd.f32 0.0, %v1350
          %v1352 = vpop.f32.mrb[0].mxu0
          %1353 = vmatprep.mubr.bf16.mxu0 0
          %1354 = vmatmul.mubr.bf16.gmra.mrb[0].mxu0 %v1099
          %v1355 = vpop.f32.mrb[0].mxu0
          %v1356 = vadd.f32 0.0, %v1355
          %v1357 = vpop.f32.mrb[0].mxu0
          %v1358 = vpop.f32.mrb[0].mxu0
          %v1359 = vadd.f32 0.0, %v1358
          %v1360 = vpop.f32.mrb[0].mxu0
          %1361 = vmatprep.mubr.bf16.mxu0 0
          %1362 = vmatmul.mubr.bf16.gmra.mrb[0].mxu0 %v1100
          %v1363 = vpop.f32.mrb[0].mxu0
          %v1364 = vadd.f32 0.0, %v1363
          %v1365 = vpop.f32.mrb[0].mxu0
          %v1366 = vpop.f32.mrb[0].mxu0
          %v1367 = vadd.f32 0.0, %v1366
          %v1368 = vpop.f32.mrb[0].mxu0
          %1369 = vmatprep.mubr.bf16.mxu0 0
          %1370 = vmatmul.mubr.bf16.gmra.mrb[0].mxu0 %v1101
          %v1371 = vpop.f32.mrb[0].mxu0
          %v1372 = vadd.f32 0.0, %v1371
          %v1373 = vpop.f32.mrb[0].mxu0
          %v1374 = vpop.f32.mrb[0].mxu0
          %v1375 = vadd.f32 0.0, %v1374
          %v1376 = vpop.f32.mrb[0].mxu0
          %1377 = vmatprep.mubr.bf16.mxu0 0
          %1378 = vmatmul.mubr.bf16.gmra.mrb[0].mxu0 %v1102
          %v1379 = vpop.f32.mrb[0].mxu0
          %v1380 = vadd.f32 0.0, %v1379
          %v1381 = vpop.f32.mrb[0].mxu0
          %v1382 = vpop.f32.mrb[0].mxu0
          %v1383 = vadd.f32 0.0, %v1382
          %v1384 = vpop.f32.mrb[0].mxu0
          %1385 = vmatprep.mubr.bf16.mxu0 0
          %1386 = vmatmul.mubr.bf16.gmra.mrb[0].mxu0 %v1103
          %v1387 = vpop.f32.mrb[0].mxu0
          %v1388 = vadd.f32 0.0, %v1387
          %v1389 = vpop.f32.mrb[0].mxu0
          %v1390 = vpop.f32.mrb[0].mxu0
          %v1391 = vadd.f32 0.0, %v1390
          %v1392 = vpop.f32.mrb[0].mxu0
          %1393 = vmatprep.mubr.bf16.mxu0 0
          %1394 = vmatmul.mubr.bf16.gmra.mrb[0].mxu0 %v1104
          %v1395 = vpop.f32.mrb[0].mxu0
          %v1396 = vadd.f32 0.0, %v1395
          %v1397 = vpop.f32.mrb[0].mxu0
          %v1398 = vpop.f32.mrb[0].mxu0
          %v1399 = vadd.f32 0.0, %v1398
          %v1400 = vpop.f32.mrb[0].mxu0
          %1401 = vmatprep.mubr.bf16.mxu0 0
          %1402 = vmatmul.mubr.bf16.gmra.mrb[0].mxu0 %v1105
          %v1403 = vpop.f32.mrb[0].mxu0
          %v1404 = vadd.f32 0.0, %v1403
          %v1405 = vpop.f32.mrb[0].mxu0
          %v1406 = vpop.f32.mrb[0].mxu0
          %v1407 = vadd.f32 0.0, %v1406
          %v1408 = vpop.f32.mrb[0].mxu0
          %1409 = vmatprep.mubr.bf16.mxu0 0
          %1410 = vmatmul.mubr.bf16.gmra.mrb[0].mxu0 %v1106
          %v1411 = vpop.f32.mrb[0].mxu0
          %v1412 = vadd.f32 0.0, %v1411
          %v1413 = vpop.f32.mrb[0].mxu0
          %v1414 = vpop.f32.mrb[0].mxu0
          %v1415 = vadd.f32 0.0, %v1414
          %v1416 = vpop.f32.mrb[0].mxu0
          %1417 = vmatprep.mubr.bf16.mxu0 0
          %1418 = vmatmul.mubr.bf16.gmra.mrb[0].mxu0 %v1107
          %v1419 = vpop.f32.mrb[0].mxu0
          %v1420 = vadd.f32 0.0, %v1419
          %v1421 = vpop.f32.mrb[0].mxu0
          %v1422 = vpop.f32.mrb[0].mxu0
          %v1423 = vadd.f32 0.0, %v1422
          %v1424 = vpop.f32.mrb[0].mxu0
          %1425 = vmatprep.mubr.bf16.mxu0 0
          %1426 = vmatmul.mubr.bf16.gmra.mrb[0].mxu0 %v1108
          %v1427 = vpop.f32.mrb[0].mxu0
          %v1428 = vadd.f32 0.0, %v1427
          %v1429 = vpop.f32.mrb[0].mxu0
          %v1430 = vpop.f32.mrb[0].mxu0
          %v1431 = vadd.f32 0.0, %v1430
          %v1432 = vpop.f32.mrb[0].mxu0
          %1433 = vmatprep.mubr.bf16.mxu0 0
          %1434 = vmatmul.mubr.bf16.gmra.mrb[0].mxu0 %v1109
          %v1435 = vpop.f32.mrb[0].mxu0
          %v1436 = vadd.f32 0.0, %v1435
          %v1437 = vpop.f32.mrb[0].mxu0
          %v1438 = vpop.f32.mrb[0].mxu0
          %v1439 = vadd.f32 0.0, %v1438
          %v1440 = vpop.f32.mrb[0].mxu0
          %1441 = vmatprep.mubr.bf16.mxu0 0
          %1442 = vmatmul.mubr.bf16.gmra.mrb[0].mxu0 %v1110
          %v1443 = vpop.f32.mrb[0].mxu0
          %v1444 = vadd.f32 0.0, %v1443
          %v1445 = vpop.f32.mrb[0].mxu0
          %v1446 = vpop.f32.mrb[0].mxu0
          %v1447 = vadd.f32 0.0, %v1446
          %v1448 = vpop.f32.mrb[0].mxu0
          %1449 = vmatprep.mubr.bf16.mxu0 0
          %1450 = vmatmul.mubr.bf16.gmra.mrb[0].mxu0 %v1111
          %v1451 = vpop.f32.mrb[0].mxu0
          %v1452 = vadd.f32 0.0, %v1451
          %v1453 = vpop.f32.mrb[0].mxu0
          %v1454 = vpop.f32.mrb[0].mxu0
          %v1455 = vadd.f32 0.0, %v1454
          %v1456 = vpop.f32.mrb[0].mxu0
          %1457 = vmatprep.mubr.bf16.mxu0 0
          %1458 = vmatmul.mubr.bf16.gmra.mrb[0].mxu0 %v1112
          %v1459 = vpop.f32.mrb[0].mxu0
          %v1460 = vadd.f32 0.0, %v1459
          %v1461 = vpop.f32.mrb[0].mxu0
          %v1462 = vpop.f32.mrb[0].mxu0
          %v1463 = vadd.f32 0.0, %v1462
          %v1464 = vpop.f32.mrb[0].mxu0
          %1465 = vdwg.mxu0
          %v1466 = vpack.c.bf16 %v1215, %v1212
          %v1467 = vpack.c.bf16 %v1223, %v1220
          %v1468 = vpack.c.bf16 %v1231, %v1228
          %v1469 = vpack.c.bf16 %v1239, %v1236
          %v1470 = vpack.c.bf16 %v1247, %v1244
          %v1471 = vpack.c.bf16 %v1255, %v1252
          %v1472 = vpack.c.bf16 %v1263, %v1260
          %v1473 = vpack.c.bf16 %v1271, %v1268
          %v1474 = vpack.c.bf16 %v1279, %v1276
          %v1475 = vpack.c.bf16 %v1287, %v1284
          %v1476 = vpack.c.bf16 %v1295, %v1292
          %v1477 = vpack.c.bf16 %v1303, %v1300
          %v1478 = vpack.c.bf16 %v1311, %v1308
          %v1479 = vpack.c.bf16 %v1319, %v1316
          %v1480 = vpack.c.bf16 %v1327, %v1324
          %v1481 = vpack.c.bf16 %v1335, %v1332
          %v1482 = vpack.c.bf16 %v1343, %v1340
          %v1483 = vpack.c.bf16 %v1351, %v1348
          %v1484 = vpack.c.bf16 %v1359, %v1356
          %v1485 = vpack.c.bf16 %v1367, %v1364
          %v1486 = vpack.c.bf16 %v1375, %v1372
          %v1487 = vpack.c.bf16 %v1383, %v1380
          %v1488 = vpack.c.bf16 %v1391, %v1388
          %v1489 = vpack.c.bf16 %v1399, %v1396
          %v1490 = vpack.c.bf16 %v1407, %v1404
          %v1491 = vpack.c.bf16 %v1415, %v1412
          %v1492 = vpack.c.bf16 %v1423, %v1420
          %v1493 = vpack.c.bf16 %v1431, %v1428
          %v1494 = vpack.c.bf16 %v1439, %v1436
          %v1495 = vpack.c.bf16 %v1447, %v1444
          %v1496 = vpack.c.bf16 %v1455, %v1452
          %v1497 = vpack.c.bf16 %v1463, %v1460
          %s1498 = smul.addr %s1077, 8
          %s1499 = scalar_lea.vmem [#allocation3], %s1498
          %1500 = vst [vmem:[%s1499] sm:$0xff] %v1466
          %1501 = vst [vmem:[%s1499 + $0x8] sm:$0xff] %v1467
          %1502 = vst [vmem:[%s1499 + $0x10] sm:$0xff] %v1468
          %1503 = vst [vmem:[%s1499 + $0x18] sm:$0xff] %v1469
          %1504 = vst [vmem:[%s1499 + $0x20] sm:$0xff] %v1470
          %1505 = vst [vmem:[%s1499 + $0x28] sm:$0xff] %v1471
          %1506 = vst [vmem:[%s1499 + $0x30] sm:$0xff] %v1472
          %1507 = vst [vmem:[%s1499 + $0x38] sm:$0xff] %v1473
          %1508 = vst [vmem:[%s1499 + $0x40] sm:$0xff] %v1474
          %1509 = vst [vmem:[%s1499 + $0x48] sm:$0xff] %v1475
          %1510 = vst [vmem:[%s1499 + $0x50] sm:$0xff] %v1476
          %1511 = vst [vmem:[%s1499 + $0x58] sm:$0xff] %v1477
          %1512 = vst [vmem:[%s1499 + $0x60] sm:$0xff] %v1478
          %1513 = vst [vmem:[%s1499 + $0x68] sm:$0xff] %v1479
          %1514 = vst [vmem:[%s1499 + $0x70] sm:$0xff] %v1480
          %1515 = vst [vmem:[%s1499 + $0x78] sm:$0xff] %v1481
          %1516 = vst [vmem:[%s1499 + $0x80] sm:$0xff] %v1482
          %1517 = vst [vmem:[%s1499 + $0x88] sm:$0xff] %v1483
          %1518 = vst [vmem:[%s1499 + $0x90] sm:$0xff] %v1484
          %1519 = vst [vmem:[%s1499 + $0x98] sm:$0xff] %v1485
          %1520 = vst [vmem:[%s1499 + $0xa0] sm:$0xff] %v1486
          %1521 = vst [vmem:[%s1499 + $0xa8] sm:$0xff] %v1487
          %1522 = vst [vmem:[%s1499 + $0xb0] sm:$0xff] %v1488
          %1523 = vst [vmem:[%s1499 + $0xb8] sm:$0xff] %v1489
          %1524 = vst [vmem:[%s1499 + $0xc0] sm:$0xff] %v1490
          %1525 = vst [vmem:[%s1499 + $0xc8] sm:$0xff] %v1491
          %1526 = vst [vmem:[%s1499 + $0xd0] sm:$0xff] %v1492
          %1527 = vst [vmem:[%s1499 + $0xd8] sm:$0xff] %v1493
          %1528 = vst [vmem:[%s1499 + $0xe0] sm:$0xff] %v1494
          %1529 = vst [vmem:[%s1499 + $0xe8] sm:$0xff] %v1495
          %1530 = vst [vmem:[%s1499 + $0xf0] sm:$0xff] %v1496
          %1531 = vst [vmem:[%s1499 + $0xf8] sm:$0xff] %v1497
        $region64: #{tpu_custom_call.1} parent=39 // pred_fallthru
          _
        %v1532 = vld [vmem:[%s319] sm:$0xff]
        %v1533 = vld [vmem:[%s319 + $0x8] sm:$0xff]
        %v1534 = vld [vmem:[%s319 + $0x10] sm:$0xff]
        %v1535 = vld [vmem:[%s319 + $0x18] sm:$0xff]
        %v1536 = vld [vmem:[%s319 + $0x20] sm:$0xff]
        %v1537 = vld [vmem:[%s319 + $0x28] sm:$0xff]
        %v1538 = vld [vmem:[%s319 + $0x30] sm:$0xff]
        %v1539 = vld [vmem:[%s319 + $0x38] sm:$0xff]
        %v1540 = vld [vmem:[%s319 + $0x40] sm:$0xff]
        %v1541 = vld [vmem:[%s319 + $0x48] sm:$0xff]
        %v1542 = vld [vmem:[%s319 + $0x50] sm:$0xff]
        %v1543 = vld [vmem:[%s319 + $0x58] sm:$0xff]
        %v1544 = vld [vmem:[%s319 + $0x60] sm:$0xff]
        %v1545 = vld [vmem:[%s319 + $0x68] sm:$0xff]
        %v1546 = vld [vmem:[%s319 + $0x70] sm:$0xff]
        %v1547 = vld [vmem:[%s319 + $0x78] sm:$0xff]
        %v1548 = vld [vmem:[%s319 + $0x80] sm:$0xff]
        %v1549 = vld [vmem:[%s319 + $0x88] sm:$0xff]
        %v1550 = vld [vmem:[%s319 + $0x90] sm:$0xff]
        %v1551 = vld [vmem:[%s319 + $0x98] sm:$0xff]
        %v1552 = vld [vmem:[%s319 + $0xa0] sm:$0xff]
        %v1553 = vld [vmem:[%s319 + $0xa8] sm:$0xff]
        %v1554 = vld [vmem:[%s319 + $0xb0] sm:$0xff]
        %v1555 = vld [vmem:[%s319 + $0xb8] sm:$0xff]
        %v1556 = vld [vmem:[%s319 + $0xc0] sm:$0xff]
        %v1557 = vld [vmem:[%s319 + $0xc8] sm:$0xff]
        %v1558 = vld [vmem:[%s319 + $0xd0] sm:$0xff]
        %v1559 = vld [vmem:[%s319 + $0xd8] sm:$0xff]
        %v1560 = vld [vmem:[%s319 + $0xe0] sm:$0xff]
        %v1561 = vld [vmem:[%s319 + $0xe8] sm:$0xff]
        %v1562 = vld [vmem:[%s319 + $0xf0] sm:$0xff]
        %v1563 = vld [vmem:[%s319 + $0xf8] sm:$0xff]
        %v1564 = vld [vmem:[%s319 + $0x100] sm:$0xff]
        %v1565 = vld [vmem:[%s319 + $0x108] sm:$0xff]
        %v1566 = vld [vmem:[%s319 + $0x110] sm:$0xff]
        %v1567 = vld [vmem:[%s319 + $0x118] sm:$0xff]
        %v1568 = vld [vmem:[%s319 + $0x120] sm:$0xff]
        %v1569 = vld [vmem:[%s319 + $0x128] sm:$0xff]
        %v1570 = vld [vmem:[%s319 + $0x130] sm:$0xff]
        %v1571 = vld [vmem:[%s319 + $0x138] sm:$0xff]
        %v1572 = vld [vmem:[%s319 + $0x140] sm:$0xff]
        %v1573 = vld [vmem:[%s319 + $0x148] sm:$0xff]
        %v1574 = vld [vmem:[%s319 + $0x150] sm:$0xff]
        %v1575 = vld [vmem:[%s319 + $0x158] sm:$0xff]
        %v1576 = vld [vmem:[%s319 + $0x160] sm:$0xff]
        %v1577 = vld [vmem:[%s319 + $0x168] sm:$0xff]
        %v1578 = vld [vmem:[%s319 + $0x170] sm:$0xff]
        %v1579 = vld [vmem:[%s319 + $0x178] sm:$0xff]
        %v1580 = vld [vmem:[%s319 + $0x180] sm:$0xff]
        %v1581 = vld [vmem:[%s319 + $0x188] sm:$0xff]
        %v1582 = vld [vmem:[%s319 + $0x190] sm:$0xff]
        %v1583 = vld [vmem:[%s319 + $0x198] sm:$0xff]
        %v1584 = vld [vmem:[%s319 + $0x1a0] sm:$0xff]
        %v1585 = vld [vmem:[%s319 + $0x1a8] sm:$0xff]
        %v1586 = vld [vmem:[%s319 + $0x1b0] sm:$0xff]
        %v1587 = vld [vmem:[%s319 + $0x1b8] sm:$0xff]
        %v1588 = vld [vmem:[%s319 + $0x1c0] sm:$0xff]
        %v1589 = vld [vmem:[%s319 + $0x1c8] sm:$0xff]
        %v1590 = vld [vmem:[%s319 + $0x1d0] sm:$0xff]
        %v1591 = vld [vmem:[%s319 + $0x1d8] sm:$0xff]
        %v1592 = vld [vmem:[%s319 + $0x1e0] sm:$0xff]
        %v1593 = vld [vmem:[%s319 + $0x1e8] sm:$0xff]
        %v1594 = vld [vmem:[%s319 + $0x1f0] sm:$0xff]
        %v1595 = vld [vmem:[%s319 + $0x1f8] sm:$0xff]
        %s1596 = sshra.s32 %s388, 4
        %s1597 = sand.u32 %s388, 15
        %s1598 = smul.addr %s1596, 8
        %s1599 = scalar_lea.vmem [#allocation3], %s1598
        %v1600 = vld [vmem:[%s1599] sm:$0xff]
        %v1601 = vld [vmem:[%s1599 + $0x8] sm:$0xff]
        %v1602 = vld [vmem:[%s1599 + $0x10] sm:$0xff]
        %v1603 = vld [vmem:[%s1599 + $0x18] sm:$0xff]
        %v1604 = vld [vmem:[%s1599 + $0x20] sm:$0xff]
        %v1605 = vld [vmem:[%s1599 + $0x28] sm:$0xff]
        %v1606 = vld [vmem:[%s1599 + $0x30] sm:$0xff]
        %v1607 = vld [vmem:[%s1599 + $0x38] sm:$0xff]
        %v1608 = vld [vmem:[%s1599 + $0x40] sm:$0xff]
        %v1609 = vld [vmem:[%s1599 + $0x48] sm:$0xff]
        %v1610 = vld [vmem:[%s1599 + $0x50] sm:$0xff]
        %v1611 = vld [vmem:[%s1599 + $0x58] sm:$0xff]
        %v1612 = vld [vmem:[%s1599 + $0x60] sm:$0xff]
        %v1613 = vld [vmem:[%s1599 + $0x68] sm:$0xff]
        %v1614 = vld [vmem:[%s1599 + $0x70] sm:$0xff]
        %v1615 = vld [vmem:[%s1599 + $0x78] sm:$0xff]
        %v1616 = vld [vmem:[%s1599 + $0x80] sm:$0xff]
        %v1617 = vld [vmem:[%s1599 + $0x88] sm:$0xff]
        %v1618 = vld [vmem:[%s1599 + $0x90] sm:$0xff]
        %v1619 = vld [vmem:[%s1599 + $0x98] sm:$0xff]
        %v1620 = vld [vmem:[%s1599 + $0xa0] sm:$0xff]
        %v1621 = vld [vmem:[%s1599 + $0xa8] sm:$0xff]
        %v1622 = vld [vmem:[%s1599 + $0xb0] sm:$0xff]
        %v1623 = vld [vmem:[%s1599 + $0xb8] sm:$0xff]
        %v1624 = vld [vmem:[%s1599 + $0xc0] sm:$0xff]
        %v1625 = vld [vmem:[%s1599 + $0xc8] sm:$0xff]
        %v1626 = vld [vmem:[%s1599 + $0xd0] sm:$0xff]
        %v1627 = vld [vmem:[%s1599 + $0xd8] sm:$0xff]
        %v1628 = vld [vmem:[%s1599 + $0xe0] sm:$0xff]
        %v1629 = vld [vmem:[%s1599 + $0xe8] sm:$0xff]
        %v1630 = vld [vmem:[%s1599 + $0xf0] sm:$0xff]
        %v1631 = vld [vmem:[%s1599 + $0xf8] sm:$0xff]
        %v1696 = vunpack.c.l.b16 %v1532
        %v1697 = vunpack.c.h.b16 %v1532
        %v1698 = vunpack.c.l.b16 %v1533
        %v1699 = vunpack.c.h.b16 %v1533
        %v1700 = vunpack.c.l.b16 %v1534
        %v1701 = vunpack.c.h.b16 %v1534
        %v1702 = vunpack.c.l.b16 %v1535
        %v1703 = vunpack.c.h.b16 %v1535
        %v1704 = vunpack.c.l.b16 %v1536
        %v1705 = vunpack.c.h.b16 %v1536
        %v1706 = vunpack.c.l.b16 %v1537
        %v1707 = vunpack.c.h.b16 %v1537
        %v1708 = vunpack.c.l.b16 %v1538
        %v1709 = vunpack.c.h.b16 %v1538
        %v1710 = vunpack.c.l.b16 %v1539
        %v1711 = vunpack.c.h.b16 %v1539
        %v1712 = vunpack.c.l.b16 %v1540
        %v1713 = vunpack.c.h.b16 %v1540
        %v1714 = vunpack.c.l.b16 %v1541
        %v1715 = vunpack.c.h.b16 %v1541
        %v1716 = vunpack.c.l.b16 %v1542
        %v1717 = vunpack.c.h.b16 %v1542
        %v1718 = vunpack.c.l.b16 %v1543
        %v1719 = vunpack.c.h.b16 %v1543
        %v1720 = vunpack.c.l.b16 %v1544
        %v1721 = vunpack.c.h.b16 %v1544
        %v1722 = vunpack.c.l.b16 %v1545
        %v1723 = vunpack.c.h.b16 %v1545
        %v1724 = vunpack.c.l.b16 %v1546
        %v1725 = vunpack.c.h.b16 %v1546
        %v1726 = vunpack.c.l.b16 %v1547
        %v1727 = vunpack.c.h.b16 %v1547
        %v1728 = vunpack.c.l.b16 %v1548
        %v1729 = vunpack.c.h.b16 %v1548
        %v1730 = vunpack.c.l.b16 %v1549
        %v1731 = vunpack.c.h.b16 %v1549
        %v1732 = vunpack.c.l.b16 %v1550
        %v1733 = vunpack.c.h.b16 %v1550
        %v1734 = vunpack.c.l.b16 %v1551
        %v1735 = vunpack.c.h.b16 %v1551
        %v1736 = vunpack.c.l.b16 %v1552
        %v1737 = vunpack.c.h.b16 %v1552
        %v1738 = vunpack.c.l.b16 %v1553
        %v1739 = vunpack.c.h.b16 %v1553
        %v1740 = vunpack.c.l.b16 %v1554
        %v1741 = vunpack.c.h.b16 %v1554
        %v1742 = vunpack.c.l.b16 %v1555
        %v1743 = vunpack.c.h.b16 %v1555
        %v1744 = vunpack.c.l.b16 %v1556
        %v1745 = vunpack.c.h.b16 %v1556
        %v1746 = vunpack.c.l.b16 %v1557
        %v1747 = vunpack.c.h.b16 %v1557
        %v1748 = vunpack.c.l.b16 %v1558
        %v1749 = vunpack.c.h.b16 %v1558
        %v1750 = vunpack.c.l.b16 %v1559
        %v1751 = vunpack.c.h.b16 %v1559
        %v1752 = vunpack.c.l.b16 %v1560
        %v1753 = vunpack.c.h.b16 %v1560
        %v1754 = vunpack.c.l.b16 %v1561
        %v1755 = vunpack.c.h.b16 %v1561
        %v1756 = vunpack.c.l.b16 %v1562
        %v1757 = vunpack.c.h.b16 %v1562
        %v1758 = vunpack.c.l.b16 %v1563
        %v1759 = vunpack.c.h.b16 %v1563
        %v1760 = vunpack.c.l.b16 %v1564
        %v1761 = vunpack.c.h.b16 %v1564
        %v1762 = vunpack.c.l.b16 %v1565
        %v1763 = vunpack.c.h.b16 %v1565
        %v1764 = vunpack.c.l.b16 %v1566
        %v1765 = vunpack.c.h.b16 %v1566
        %v1766 = vunpack.c.l.b16 %v1567
        %v1767 = vunpack.c.h.b16 %v1567
        %v1768 = vunpack.c.l.b16 %v1568
        %v1769 = vunpack.c.h.b16 %v1568
        %v1770 = vunpack.c.l.b16 %v1569
        %v1771 = vunpack.c.h.b16 %v1569
        %v1772 = vunpack.c.l.b16 %v1570
        %v1773 = vunpack.c.h.b16 %v1570
        %v1774 = vunpack.c.l.b16 %v1571
        %v1775 = vunpack.c.h.b16 %v1571
        %v1776 = vunpack.c.l.b16 %v1572
        %v1777 = vunpack.c.h.b16 %v1572
        %v1778 = vunpack.c.l.b16 %v1573
        %v1779 = vunpack.c.h.b16 %v1573
        %v1780 = vunpack.c.l.b16 %v1574
        %v1781 = vunpack.c.h.b16 %v1574
        %v1782 = vunpack.c.l.b16 %v1575
        %v1783 = vunpack.c.h.b16 %v1575
        %v1784 = vunpack.c.l.b16 %v1576
        %v1785 = vunpack.c.h.b16 %v1576
        %v1786 = vunpack.c.l.b16 %v1577
        %v1787 = vunpack.c.h.b16 %v1577
        %v1788 = vunpack.c.l.b16 %v1578
        %v1789 = vunpack.c.h.b16 %v1578
        %v1790 = vunpack.c.l.b16 %v1579
        %v1791 = vunpack.c.h.b16 %v1579
        %v1792 = vunpack.c.l.b16 %v1580
        %v1793 = vunpack.c.h.b16 %v1580
        %v1794 = vunpack.c.l.b16 %v1581
        %v1795 = vunpack.c.h.b16 %v1581
        %v1796 = vunpack.c.l.b16 %v1582
        %v1797 = vunpack.c.h.b16 %v1582
        %v1798 = vunpack.c.l.b16 %v1583
        %v1799 = vunpack.c.h.b16 %v1583
        %v1800 = vunpack.c.l.b16 %v1584
        %v1801 = vunpack.c.h.b16 %v1584
        %v1802 = vunpack.c.l.b16 %v1585
        %v1803 = vunpack.c.h.b16 %v1585
        %v1804 = vunpack.c.l.b16 %v1586
        %v1805 = vunpack.c.h.b16 %v1586
        %v1806 = vunpack.c.l.b16 %v1587
        %v1807 = vunpack.c.h.b16 %v1587
        %v1808 = vunpack.c.l.b16 %v1588
        %v1809 = vunpack.c.h.b16 %v1588
        %v1810 = vunpack.c.l.b16 %v1589
        %v1811 = vunpack.c.h.b16 %v1589
        %v1812 = vunpack.c.l.b16 %v1590
        %v1813 = vunpack.c.h.b16 %v1590
        %v1814 = vunpack.c.l.b16 %v1591
        %v1815 = vunpack.c.h.b16 %v1591
        %v1816 = vunpack.c.l.b16 %v1592
        %v1817 = vunpack.c.h.b16 %v1592
        %v1818 = vunpack.c.l.b16 %v1593
        %v1819 = vunpack.c.h.b16 %v1593
        %v1820 = vunpack.c.l.b16 %v1594
        %v1821 = vunpack.c.h.b16 %v1594
        %v1822 = vunpack.c.l.b16 %v1595
        %v1823 = vunpack.c.h.b16 %v1595
        %v1824 = vpack.c.b16 %v1700, %v1696
        %v1825 = vpack.c.b16 %v1701, %v1697
        %v1826 = vpack.c.b16 %v1702, %v1698
        %v1827 = vpack.c.b16 %v1703, %v1699
        %v1828 = vpack.c.b16 %v1708, %v1704
        %v1829 = vpack.c.b16 %v1709, %v1705
        %v1830 = vpack.c.b16 %v1710, %v1706
        %v1831 = vpack.c.b16 %v1711, %v1707
        %v1832 = vpack.c.b16 %v1716, %v1712
        %v1833 = vpack.c.b16 %v1717, %v1713
        %v1834 = vpack.c.b16 %v1718, %v1714
        %v1835 = vpack.c.b16 %v1719, %v1715
        %v1836 = vpack.c.b16 %v1724, %v1720
        %v1837 = vpack.c.b16 %v1725, %v1721
        %v1838 = vpack.c.b16 %v1726, %v1722
        %v1839 = vpack.c.b16 %v1727, %v1723
        %v1840 = vpack.c.b16 %v1732, %v1728
        %v1841 = vpack.c.b16 %v1733, %v1729
        %v1842 = vpack.c.b16 %v1734, %v1730
        %v1843 = vpack.c.b16 %v1735, %v1731
        %v1844 = vpack.c.b16 %v1740, %v1736
        %v1845 = vpack.c.b16 %v1741, %v1737
        %v1846 = vpack.c.b16 %v1742, %v1738
        %v1847 = vpack.c.b16 %v1743, %v1739
        %v1848 = vpack.c.b16 %v1748, %v1744
        %v1849 = vpack.c.b16 %v1749, %v1745
        %v1850 = vpack.c.b16 %v1750, %v1746
        %v1851 = vpack.c.b16 %v1751, %v1747
        %v1852 = vpack.c.b16 %v1756, %v1752
        %v1853 = vpack.c.b16 %v1757, %v1753
        %v1854 = vpack.c.b16 %v1758, %v1754
        %v1855 = vpack.c.b16 %v1759, %v1755
        %v1856 = vpack.c.b16 %v1764, %v1760
        %v1857 = vpack.c.b16 %v1765, %v1761
        %v1858 = vpack.c.b16 %v1766, %v1762
        %v1859 = vpack.c.b16 %v1767, %v1763
        %v1860 = vpack.c.b16 %v1772, %v1768
        %v1861 = vpack.c.b16 %v1773, %v1769
        %v1862 = vpack.c.b16 %v1774, %v1770
        %v1863 = vpack.c.b16 %v1775, %v1771
        %v1864 = vpack.c.b16 %v1780, %v1776
        %v1865 = vpack.c.b16 %v1781, %v1777
        %v1866 = vpack.c.b16 %v1782, %v1778
        %v1867 = vpack.c.b16 %v1783, %v1779
        %v1868 = vpack.c.b16 %v1788, %v1784
        %v1869 = vpack.c.b16 %v1789, %v1785
        %v1870 = vpack.c.b16 %v1790, %v1786
        %v1871 = vpack.c.b16 %v1791, %v1787
        %v1872 = vpack.c.b16 %v1796, %v1792
        %v1873 = vpack.c.b16 %v1797, %v1793
        %v1874 = vpack.c.b16 %v1798, %v1794
        %v1875 = vpack.c.b16 %v1799, %v1795
        %v1876 = vpack.c.b16 %v1804, %v1800
        %v1877 = vpack.c.b16 %v1805, %v1801
        %v1878 = vpack.c.b16 %v1806, %v1802
        %v1879 = vpack.c.b16 %v1807, %v1803
        %v1880 = vpack.c.b16 %v1812, %v1808
        %v1881 = vpack.c.b16 %v1813, %v1809
        %v1882 = vpack.c.b16 %v1814, %v1810
        %v1883 = vpack.c.b16 %v1815, %v1811
        %v1884 = vpack.c.b16 %v1820, %v1816
        %v1885 = vpack.c.b16 %v1821, %v1817
        %v1886 = vpack.c.b16 %v1822, %v1818
        %v1887 = vpack.c.b16 %v1823, %v1819
        %1952 = vmatprep.subr.bf16.mxu0 0
        %1953 = vmatpush1.bf16.msra.mxu0 %v1600
        %1954 = vmatprep.subr.bf16.mxu0 0
        %1955 = vmatpush1.bf16.msra.mxu0 %v1601
        %1956 = vmatprep.subr.bf16.mxu0 0
        %1957 = vmatpush1.bf16.msra.mxu0 %v1602
        %1958 = vmatprep.subr.bf16.mxu0 0
        %1959 = vmatpush1.bf16.msra.mxu0 %v1603
        %1960 = vmatprep.subr.bf16.mxu0 0
        %1961 = vmatpush1.bf16.msra.mxu0 %v1604
        %1962 = vmatprep.subr.bf16.mxu0 0
        %1963 = vmatpush1.bf16.msra.mxu0 %v1605
        %1964 = vmatprep.subr.bf16.mxu0 0
        %1965 = vmatpush1.bf16.msra.mxu0 %v1606
        %1966 = vmatprep.subr.bf16.mxu0 0
        %1967 = vmatpush1.bf16.msra.mxu0 %v1607
        %1968 = vmatprep.subr.bf16.mxu0 0
        %1969 = vmatpush1.bf16.msra.mxu0 %v1608
        %1970 = vmatprep.subr.bf16.mxu0 0
        %1971 = vmatpush1.bf16.msra.mxu0 %v1609
        %1972 = vmatprep.subr.bf16.mxu0 0
        %1973 = vmatpush1.bf16.msra.mxu0 %v1610
        %1974 = vmatprep.subr.bf16.mxu0 0
        %1975 = vmatpush1.bf16.msra.mxu0 %v1611
        %1976 = vmatprep.subr.bf16.mxu0 0
        %1977 = vmatpush1.bf16.msra.mxu0 %v1612
        %1978 = vmatprep.subr.bf16.mxu0 0
        %1979 = vmatpush1.bf16.msra.mxu0 %v1613
        %1980 = vmatprep.subr.bf16.mxu0 0
        %1981 = vmatpush1.bf16.msra.mxu0 %v1614
        %1982 = vmatprep.subr.bf16.mxu0 0
        %1983 = vmatpush1.bf16.msra.mxu0 %v1615
        %1984 = vmatprep.mubr.bf16.mxu0 %v1825
        %1985 = vmatmul.mubr.bf16.gmra.mrb[0].mxu0 %v1824
        %v1986 = vpop.f32.mrb[0].mxu0
        %v1987 = vadd.f32 0.0, %v1986
        %v1988 = vpop.f32.mrb[0].mxu0
        %v1989 = vpop.f32.mrb[0].mxu0
        %v1990 = vadd.f32 0.0, %v1989
        %v1991 = vpop.f32.mrb[0].mxu0
        %1992 = vmatprep.mubr.bf16.mxu0 %v1829
        %1993 = vmatmul.mubr.bf16.gmra.mrb[0].mxu0 %v1828
        %v1994 = vpop.f32.mrb[0].mxu0
        %v1995 = vadd.f32 0.0, %v1994
        %v1996 = vpop.f32.mrb[0].mxu0
        %v1997 = vpop.f32.mrb[0].mxu0
        %v1998 = vadd.f32 0.0, %v1997
        %v1999 = vpop.f32.mrb[0].mxu0
        %2000 = vmatprep.mubr.bf16.mxu0 %v1833
        %2001 = vmatmul.mubr.bf16.gmra.mrb[0].mxu0 %v1832
        %v2002 = vpop.f32.mrb[0].mxu0
        %v2003 = vadd.f32 0.0, %v2002
        %v2004 = vpop.f32.mrb[0].mxu0
        %v2005 = vpop.f32.mrb[0].mxu0
        %v2006 = vadd.f32 0.0, %v2005
        %v2007 = vpop.f32.mrb[0].mxu0
        %2008 = vmatprep.mubr.bf16.mxu0 %v1837
        %2009 = vmatmul.mubr.bf16.gmra.mrb[0].mxu0 %v1836
        %v2010 = vpop.f32.mrb[0].mxu0
        %v2011 = vadd.f32 0.0, %v2010
        %v2012 = vpop.f32.mrb[0].mxu0
        %v2013 = vpop.f32.mrb[0].mxu0
        %v2014 = vadd.f32 0.0, %v2013
        %v2015 = vpop.f32.mrb[0].mxu0
        %2016 = vmatprep.mubr.bf16.mxu0 %v1841
        %2017 = vmatmul.mubr.bf16.gmra.mrb[0].mxu0 %v1840
        %v2018 = vpop.f32.mrb[0].mxu0
        %v2019 = vadd.f32 0.0, %v2018
        %v2020 = vpop.f32.mrb[0].mxu0
        %v2021 = vpop.f32.mrb[0].mxu0
        %v2022 = vadd.f32 0.0, %v2021
        %v2023 = vpop.f32.mrb[0].mxu0
        %2024 = vmatprep.mubr.bf16.mxu0 %v1845
        %2025 = vmatmul.mubr.bf16.gmra.mrb[0].mxu0 %v1844
        %v2026 = vpop.f32.mrb[0].mxu0
        %v2027 = vadd.f32 0.0, %v2026
        %v2028 = vpop.f32.mrb[0].mxu0
        %v2029 = vpop.f32.mrb[0].mxu0
        %v2030 = vadd.f32 0.0, %v2029
        %v2031 = vpop.f32.mrb[0].mxu0
        %2032 = vmatprep.mubr.bf16.mxu0 %v1849
        %2033 = vmatmul.mubr.bf16.gmra.mrb[0].mxu0 %v1848
        %v2034 = vpop.f32.mrb[0].mxu0
        %v2035 = vadd.f32 0.0, %v2034
        %v2036 = vpop.f32.mrb[0].mxu0
        %v2037 = vpop.f32.mrb[0].mxu0
        %v2038 = vadd.f32 0.0, %v2037
        %v2039 = vpop.f32.mrb[0].mxu0
        %2040 = vmatprep.mubr.bf16.mxu0 %v1853
        %2041 = vmatmul.mubr.bf16.gmra.mrb[0].mxu0 %v1852
        %v2042 = vpop.f32.mrb[0].mxu0
        %v2043 = vadd.f32 0.0, %v2042
        %v2044 = vpop.f32.mrb[0].mxu0
        %v2045 = vpop.f32.mrb[0].mxu0
        %v2046 = vadd.f32 0.0, %v2045
        %v2047 = vpop.f32.mrb[0].mxu0
        %2048 = vmatprep.mubr.bf16.mxu0 %v1857
        %2049 = vmatmul.mubr.bf16.gmra.mrb[0].mxu0 %v1856
        %v2050 = vpop.f32.mrb[0].mxu0
        %v2051 = vadd.f32 0.0, %v2050
        %v2052 = vpop.f32.mrb[0].mxu0
        %v2053 = vpop.f32.mrb[0].mxu0
        %v2054 = vadd.f32 0.0, %v2053
        %v2055 = vpop.f32.mrb[0].mxu0
        %2056 = vmatprep.mubr.bf16.mxu0 %v1861
        %2057 = vmatmul.mubr.bf16.gmra.mrb[0].mxu0 %v1860
        %v2058 = vpop.f32.mrb[0].mxu0
        %v2059 = vadd.f32 0.0, %v2058
        %v2060 = vpop.f32.mrb[0].mxu0
        %v2061 = vpop.f32.mrb[0].mxu0
        %v2062 = vadd.f32 0.0, %v2061
        %v2063 = vpop.f32.mrb[0].mxu0
        %2064 = vmatprep.mubr.bf16.mxu0 %v1865
        %2065 = vmatmul.mubr.bf16.gmra.mrb[0].mxu0 %v1864
        %v2066 = vpop.f32.mrb[0].mxu0
        %v2067 = vadd.f32 0.0, %v2066
        %v2068 = vpop.f32.mrb[0].mxu0
        %v2069 = vpop.f32.mrb[0].mxu0
        %v2070 = vadd.f32 0.0, %v2069
        %v2071 = vpop.f32.mrb[0].mxu0
        %2072 = vmatprep.mubr.bf16.mxu0 %v1869
        %2073 = vmatmul.mubr.bf16.gmra.mrb[0].mxu0 %v1868
        %v2074 = vpop.f32.mrb[0].mxu0
        %v2075 = vadd.f32 0.0, %v2074
        %v2076 = vpop.f32.mrb[0].mxu0
        %v2077 = vpop.f32.mrb[0].mxu0
        %v2078 = vadd.f32 0.0, %v2077
        %v2079 = vpop.f32.mrb[0].mxu0
        %2080 = vmatprep.mubr.bf16.mxu0 %v1873
        %2081 = vmatmul.mubr.bf16.gmra.mrb[0].mxu0 %v1872
        %v2082 = vpop.f32.mrb[0].mxu0
        %v2083 = vadd.f32 0.0, %v2082
        %v2084 = vpop.f32.mrb[0].mxu0
        %v2085 = vpop.f32.mrb[0].mxu0
        %v2086 = vadd.f32 0.0, %v2085
        %v2087 = vpop.f32.mrb[0].mxu0
        %2088 = vmatprep.mubr.bf16.mxu0 %v1877
        %2089 = vmatmul.mubr.bf16.gmra.mrb[0].mxu0 %v1876
        %v2090 = vpop.f32.mrb[0].mxu0
        %v2091 = vadd.f32 0.0, %v2090
        %v2092 = vpop.f32.mrb[0].mxu0
        %v2093 = vpop.f32.mrb[0].mxu0
        %v2094 = vadd.f32 0.0, %v2093
        %v2095 = vpop.f32.mrb[0].mxu0
        %2096 = vmatprep.mubr.bf16.mxu0 %v1881
        %2097 = vmatmul.mubr.bf16.gmra.mrb[0].mxu0 %v1880
        %v2098 = vpop.f32.mrb[0].mxu0
        %v2099 = vadd.f32 0.0, %v2098
        %v2100 = vpop.f32.mrb[0].mxu0
        %v2101 = vpop.f32.mrb[0].mxu0
        %v2102 = vadd.f32 0.0, %v2101
        %v2103 = vpop.f32.mrb[0].mxu0
        %2104 = vmatprep.mubr.bf16.mxu0 %v1885
        %2105 = vmatmul.mubr.bf16.gmra.mrb[0].mxu0 %v1884
        %v2106 = vpop.f32.mrb[0].mxu0
        %v2107 = vadd.f32 0.0, %v2106
        %v2108 = vpop.f32.mrb[0].mxu0
        %v2109 = vpop.f32.mrb[0].mxu0
        %v2110 = vadd.f32 0.0, %v2109
        %v2111 = vpop.f32.mrb[0].mxu0
        %2112 = vdwg.mxu0
        %2113 = vmatprep.subr.bf16.mxu0 0
        %2114 = vmatpush1.bf16.msra.mxu0 %v1616
        %2115 = vmatprep.subr.bf16.mxu0 0
        %2116 = vmatpush1.bf16.msra.mxu0 %v1617
        %2117 = vmatprep.subr.bf16.mxu0 0
        %2118 = vmatpush1.bf16.msra.mxu0 %v1618
        %2119 = vmatprep.subr.bf16.mxu0 0
        %2120 = vmatpush1.bf16.msra.mxu0 %v1619
        %2121 = vmatprep.subr.bf16.mxu0 0
        %2122 = vmatpush1.bf16.msra.mxu0 %v1620
        %2123 = vmatprep.subr.bf16.mxu0 0
        %2124 = vmatpush1.bf16.msra.mxu0 %v1621
        %2125 = vmatprep.subr.bf16.mxu0 0
        %2126 = vmatpush1.bf16.msra.mxu0 %v1622
        %2127 = vmatprep.subr.bf16.mxu0 0
        %2128 = vmatpush1.bf16.msra.mxu0 %v1623
        %2129 = vmatprep.subr.bf16.mxu0 0
        %2130 = vmatpush1.bf16.msra.mxu0 %v1624
        %2131 = vmatprep.subr.bf16.mxu0 0
        %2132 = vmatpush1.bf16.msra.mxu0 %v1625
        %2133 = vmatprep.subr.bf16.mxu0 0
        %2134 = vmatpush1.bf16.msra.mxu0 %v1626
        %2135 = vmatprep.subr.bf16.mxu0 0
        %2136 = vmatpush1.bf16.msra.mxu0 %v1627
        %2137 = vmatprep.subr.bf16.mxu0 0
        %2138 = vmatpush1.bf16.msra.mxu0 %v1628
        %2139 = vmatprep.subr.bf16.mxu0 0
        %2140 = vmatpush1.bf16.msra.mxu0 %v1629
        %2141 = vmatprep.subr.bf16.mxu0 0
        %2142 = vmatpush1.bf16.msra.mxu0 %v1630
        %2143 = vmatprep.subr.bf16.mxu0 0
        %2144 = vmatpush1.bf16.msra.mxu0 %v1631
        %2145 = vmatprep.mubr.bf16.mxu0 %v1827
        %2146 = vmatmul.mubr.bf16.gmra.mrb[0].mxu0 %v1826
        %v2147 = vpop.f32.mrb[0].mxu0
        %v2148 = vadd.f32 %v1987, %v2147
        %v2149 = vpop.f32.mrb[0].mxu0
        %v2150 = vpop.f32.mrb[0].mxu0
        %v2151 = vadd.f32 %v1990, %v2150
        %v2152 = vpop.f32.mrb[0].mxu0
        %2153 = vmatprep.mubr.bf16.mxu0 %v1831
        %2154 = vmatmul.mubr.bf16.gmra.mrb[0].mxu0 %v1830
        %v2155 = vpop.f32.mrb[0].mxu0
        %v2156 = vadd.f32 %v1995, %v2155
        %v2157 = vpop.f32.mrb[0].mxu0
        %v2158 = vpop.f32.mrb[0].mxu0
        %v2159 = vadd.f32 %v1998, %v2158
        %v2160 = vpop.f32.mrb[0].mxu0
        %2161 = vmatprep.mubr.bf16.mxu0 %v1835
        %2162 = vmatmul.mubr.bf16.gmra.mrb[0].mxu0 %v1834
        %v2163 = vpop.f32.mrb[0].mxu0
        %v2164 = vadd.f32 %v2003, %v2163
        %v2165 = vpop.f32.mrb[0].mxu0
        %v2166 = vpop.f32.mrb[0].mxu0
        %v2167 = vadd.f32 %v2006, %v2166
        %v2168 = vpop.f32.mrb[0].mxu0
        %2169 = vmatprep.mubr.bf16.mxu0 %v1839
        %2170 = vmatmul.mubr.bf16.gmra.mrb[0].mxu0 %v1838
        %v2171 = vpop.f32.mrb[0].mxu0
        %v2172 = vadd.f32 %v2011, %v2171
        %v2173 = vpop.f32.mrb[0].mxu0
        %v2174 = vpop.f32.mrb[0].mxu0
        %v2175 = vadd.f32 %v2014, %v2174
        %v2176 = vpop.f32.mrb[0].mxu0
        %2177 = vmatprep.mubr.bf16.mxu0 %v1843
        %2178 = vmatmul.mubr.bf16.gmra.mrb[0].mxu0 %v1842
        %v2179 = vpop.f32.mrb[0].mxu0
        %v2180 = vadd.f32 %v2019, %v2179
        %v2181 = vpop.f32.mrb[0].mxu0
        %v2182 = vpop.f32.mrb[0].mxu0
        %v2183 = vadd.f32 %v2022, %v2182
        %v2184 = vpop.f32.mrb[0].mxu0
        %2185 = vmatprep.mubr.bf16.mxu0 %v1847
        %2186 = vmatmul.mubr.bf16.gmra.mrb[0].mxu0 %v1846
        %v2187 = vpop.f32.mrb[0].mxu0
        %v2188 = vadd.f32 %v2027, %v2187
        %v2189 = vpop.f32.mrb[0].mxu0
        %v2190 = vpop.f32.mrb[0].mxu0
        %v2191 = vadd.f32 %v2030, %v2190
        %v2192 = vpop.f32.mrb[0].mxu0
        %2193 = vmatprep.mubr.bf16.mxu0 %v1851
        %2194 = vmatmul.mubr.bf16.gmra.mrb[0].mxu0 %v1850
        %v2195 = vpop.f32.mrb[0].mxu0
        %v2196 = vadd.f32 %v2035, %v2195
        %v2197 = vpop.f32.mrb[0].mxu0
        %v2198 = vpop.f32.mrb[0].mxu0
        %v2199 = vadd.f32 %v2038, %v2198
        %v2200 = vpop.f32.mrb[0].mxu0
        %2201 = vmatprep.mubr.bf16.mxu0 %v1855
        %2202 = vmatmul.mubr.bf16.gmra.mrb[0].mxu0 %v1854
        %v2203 = vpop.f32.mrb[0].mxu0
        %v2204 = vadd.f32 %v2043, %v2203
        %v2205 = vpop.f32.mrb[0].mxu0
        %v2206 = vpop.f32.mrb[0].mxu0
        %v2207 = vadd.f32 %v2046, %v2206
        %v2208 = vpop.f32.mrb[0].mxu0
        %2209 = vmatprep.mubr.bf16.mxu0 %v1859
        %2210 = vmatmul.mubr.bf16.gmra.mrb[0].mxu0 %v1858
        %v2211 = vpop.f32.mrb[0].mxu0
        %v2212 = vadd.f32 %v2051, %v2211
        %v2213 = vpop.f32.mrb[0].mxu0
        %v2214 = vpop.f32.mrb[0].mxu0
        %v2215 = vadd.f32 %v2054, %v2214
        %v2216 = vpop.f32.mrb[0].mxu0
        %2217 = vmatprep.mubr.bf16.mxu0 %v1863
        %2218 = vmatmul.mubr.bf16.gmra.mrb[0].mxu0 %v1862
        %v2219 = vpop.f32.mrb[0].mxu0
        %v2220 = vadd.f32 %v2059, %v2219
        %v2221 = vpop.f32.mrb[0].mxu0
        %v2222 = vpop.f32.mrb[0].mxu0
        %v2223 = vadd.f32 %v2062, %v2222
        %v2224 = vpop.f32.mrb[0].mxu0
        %2225 = vmatprep.mubr.bf16.mxu0 %v1867
        %2226 = vmatmul.mubr.bf16.gmra.mrb[0].mxu0 %v1866
        %v2227 = vpop.f32.mrb[0].mxu0
        %v2228 = vadd.f32 %v2067, %v2227
        %v2229 = vpop.f32.mrb[0].mxu0
        %v2230 = vpop.f32.mrb[0].mxu0
        %v2231 = vadd.f32 %v2070, %v2230
        %v2232 = vpop.f32.mrb[0].mxu0
        %2233 = vmatprep.mubr.bf16.mxu0 %v1871
        %2234 = vmatmul.mubr.bf16.gmra.mrb[0].mxu0 %v1870
        %v2235 = vpop.f32.mrb[0].mxu0
        %v2236 = vadd.f32 %v2075, %v2235
        %v2237 = vpop.f32.mrb[0].mxu0
        %v2238 = vpop.f32.mrb[0].mxu0
        %v2239 = vadd.f32 %v2078, %v2238
        %v2240 = vpop.f32.mrb[0].mxu0
        %2241 = vmatprep.mubr.bf16.mxu0 %v1875
        %2242 = vmatmul.mubr.bf16.gmra.mrb[0].mxu0 %v1874
        %v2243 = vpop.f32.mrb[0].mxu0
        %v2244 = vadd.f32 %v2083, %v2243
        %v2245 = vpop.f32.mrb[0].mxu0
        %v2246 = vpop.f32.mrb[0].mxu0
        %v2247 = vadd.f32 %v2086, %v2246
        %v2248 = vpop.f32.mrb[0].mxu0
        %2249 = vmatprep.mubr.bf16.mxu0 %v1879
        %2250 = vmatmul.mubr.bf16.gmra.mrb[0].mxu0 %v1878
        %v2251 = vpop.f32.mrb[0].mxu0
        %v2252 = vadd.f32 %v2091, %v2251
        %v2253 = vpop.f32.mrb[0].mxu0
        %v2254 = vpop.f32.mrb[0].mxu0
        %v2255 = vadd.f32 %v2094, %v2254
        %v2256 = vpop.f32.mrb[0].mxu0
        %2257 = vmatprep.mubr.bf16.mxu0 %v1883
        %2258 = vmatmul.mubr.bf16.gmra.mrb[0].mxu0 %v1882
        %v2259 = vpop.f32.mrb[0].mxu0
        %v2260 = vadd.f32 %v2099, %v2259
        %v2261 = vpop.f32.mrb[0].mxu0
        %v2262 = vpop.f32.mrb[0].mxu0
        %v2263 = vadd.f32 %v2102, %v2262
        %v2264 = vpop.f32.mrb[0].mxu0
        %2265 = vmatprep.mubr.bf16.mxu0 %v1887
        %2266 = vmatmul.mubr.bf16.gmra.mrb[0].mxu0 %v1886
        %v2267 = vpop.f32.mrb[0].mxu0
        %v2268 = vadd.f32 %v2107, %v2267
        %v2269 = vpop.f32.mrb[0].mxu0
        %v2270 = vpop.f32.mrb[0].mxu0
        %v2271 = vadd.f32 %v2110, %v2270
        %v2272 = vpop.f32.mrb[0].mxu0
        %2273 = vdwg.mxu0
        %p2274 = scmp.eq.s32.totalorder %s33, 0
        // Predicated region
        $region65: #{tpu_custom_call.1} parent=39 // pred_check
          %p2275 = pneg %p2274
        $region66: #{tpu_custom_call.1} parent=39 // pred_check_branch
          %2277 = sbr.rel (%p2275) target = $region68
        $region67: #{tpu_custom_call.1} parent=39 // pred_region
          %2278 = vst [vmem:[#allocation4] sm:$0xff] %v2148
          %2279 = vst [vmem:[#allocation4 + $0x8] sm:$0xff] %v2151
          %2280 = vst [vmem:[#allocation4 + $0x10] sm:$0xff] %v2156
          %2281 = vst [vmem:[#allocation4 + $0x18] sm:$0xff] %v2159
          %2282 = vst [vmem:[#allocation4 + $0x20] sm:$0xff] %v2164
          %2283 = vst [vmem:[#allocation4 + $0x28] sm:$0xff] %v2167
          %2284 = vst [vmem:[#allocation4 + $0x30] sm:$0xff] %v2172
          %2285 = vst [vmem:[#allocation4 + $0x38] sm:$0xff] %v2175
          %2286 = vst [vmem:[#allocation4 + $0x40] sm:$0xff] %v2180
          %2287 = vst [vmem:[#allocation4 + $0x48] sm:$0xff] %v2183
          %2288 = vst [vmem:[#allocation4 + $0x50] sm:$0xff] %v2188
          %2289 = vst [vmem:[#allocation4 + $0x58] sm:$0xff] %v2191
          %2290 = vst [vmem:[#allocation4 + $0x60] sm:$0xff] %v2196
          %2291 = vst [vmem:[#allocation4 + $0x68] sm:$0xff] %v2199
          %2292 = vst [vmem:[#allocation4 + $0x70] sm:$0xff] %v2204
          %2293 = vst [vmem:[#allocation4 + $0x78] sm:$0xff] %v2207
          %2294 = vst [vmem:[#allocation4 + $0x80] sm:$0xff] %v2212
          %2295 = vst [vmem:[#allocation4 + $0x88] sm:$0xff] %v2215
          %2296 = vst [vmem:[#allocation4 + $0x90] sm:$0xff] %v2220
          %2297 = vst [vmem:[#allocation4 + $0x98] sm:$0xff] %v2223
          %2298 = vst [vmem:[#allocation4 + $0xa0] sm:$0xff] %v2228
          %2299 = vst [vmem:[#allocation4 + $0xa8] sm:$0xff] %v2231
          %2300 = vst [vmem:[#allocation4 + $0xb0] sm:$0xff] %v2236
          %2301 = vst [vmem:[#allocation4 + $0xb8] sm:$0xff] %v2239
          %2302 = vst [vmem:[#allocation4 + $0xc0] sm:$0xff] %v2244
          %2303 = vst [vmem:[#allocation4 + $0xc8] sm:$0xff] %v2247
          %2304 = vst [vmem:[#allocation4 + $0xd0] sm:$0xff] %v2252
          %2305 = vst [vmem:[#allocation4 + $0xd8] sm:$0xff] %v2255
          %2306 = vst [vmem:[#allocation4 + $0xe0] sm:$0xff] %v2260
          %2307 = vst [vmem:[#allocation4 + $0xe8] sm:$0xff] %v2263
          %2308 = vst [vmem:[#allocation4 + $0xf0] sm:$0xff] %v2268
          %2309 = vst [vmem:[#allocation4 + $0xf8] sm:$0xff] %v2271
        $region68: #{tpu_custom_call.1} parent=39 // pred_fallthru
          _
        %p2310 = scmp.gt.s32.totalorder %s33, 0
        // Predicated region
        $region69: #{tpu_custom_call.1} parent=39 // pred_check
          %p2311 = pneg %p2310
        $region70: #{tpu_custom_call.1} parent=39 // pred_check_branch
          %2313 = sbr.rel (%p2311) target = $region72
        $region71: #{tpu_custom_call.1} parent=39 // pred_region
          %v2314 = vld [vmem:[#allocation4] sm:$0xff]
          %v2315 = vld [vmem:[#allocation4 + $0x8] sm:$0xff]
          %v2316 = vld [vmem:[#allocation4 + $0x10] sm:$0xff]
          %v2317 = vld [vmem:[#allocation4 + $0x18] sm:$0xff]
          %v2318 = vld [vmem:[#allocation4 + $0x20] sm:$0xff]
          %v2319 = vld [vmem:[#allocation4 + $0x28] sm:$0xff]
          %v2320 = vld [vmem:[#allocation4 + $0x30] sm:$0xff]
          %v2321 = vld [vmem:[#allocation4 + $0x38] sm:$0xff]
          %v2322 = vld [vmem:[#allocation4 + $0x40] sm:$0xff]
          %v2323 = vld [vmem:[#allocation4 + $0x48] sm:$0xff]
          %v2324 = vld [vmem:[#allocation4 + $0x50] sm:$0xff]
          %v2325 = vld [vmem:[#allocation4 + $0x58] sm:$0xff]
          %v2326 = vld [vmem:[#allocation4 + $0x60] sm:$0xff]
          %v2327 = vld [vmem:[#allocation4 + $0x68] sm:$0xff]
          %v2328 = vld [vmem:[#allocation4 + $0x70] sm:$0xff]
          %v2329 = vld [vmem:[#allocation4 + $0x78] sm:$0xff]
          %v2330 = vld [vmem:[#allocation4 + $0x80] sm:$0xff]
          %v2331 = vld [vmem:[#allocation4 + $0x88] sm:$0xff]
          %v2332 = vld [vmem:[#allocation4 + $0x90] sm:$0xff]
          %v2333 = vld [vmem:[#allocation4 + $0x98] sm:$0xff]
          %v2334 = vld [vmem:[#allocation4 + $0xa0] sm:$0xff]
          %v2335 = vld [vmem:[#allocation4 + $0xa8] sm:$0xff]
          %v2336 = vld [vmem:[#allocation4 + $0xb0] sm:$0xff]
          %v2337 = vld [vmem:[#allocation4 + $0xb8] sm:$0xff]
          %v2338 = vld [vmem:[#allocation4 + $0xc0] sm:$0xff]
          %v2339 = vld [vmem:[#allocation4 + $0xc8] sm:$0xff]
          %v2340 = vld [vmem:[#allocation4 + $0xd0] sm:$0xff]
          %v2341 = vld [vmem:[#allocation4 + $0xd8] sm:$0xff]
          %v2342 = vld [vmem:[#allocation4 + $0xe0] sm:$0xff]
          %v2343 = vld [vmem:[#allocation4 + $0xe8] sm:$0xff]
          %v2344 = vld [vmem:[#allocation4 + $0xf0] sm:$0xff]
          %v2345 = vld [vmem:[#allocation4 + $0xf8] sm:$0xff]
          %v2346 = vadd.f32 %v2314, %v2148
          %v2347 = vadd.f32 %v2315, %v2151
          %v2348 = vadd.f32 %v2316, %v2156
          %v2349 = vadd.f32 %v2317, %v2159
          %v2350 = vadd.f32 %v2318, %v2164
          %v2351 = vadd.f32 %v2319, %v2167
          %v2352 = vadd.f32 %v2320, %v2172
          %v2353 = vadd.f32 %v2321, %v2175
          %v2354 = vadd.f32 %v2322, %v2180
          %v2355 = vadd.f32 %v2323, %v2183
          %v2356 = vadd.f32 %v2324, %v2188
          %v2357 = vadd.f32 %v2325, %v2191
          %v2358 = vadd.f32 %v2326, %v2196
          %v2359 = vadd.f32 %v2327, %v2199
          %v2360 = vadd.f32 %v2328, %v2204
          %v2361 = vadd.f32 %v2329, %v2207
          %v2362 = vadd.f32 %v2330, %v2212
          %v2363 = vadd.f32 %v2331, %v2215
          %v2364 = vadd.f32 %v2332, %v2220
          %v2365 = vadd.f32 %v2333, %v2223
          %v2366 = vadd.f32 %v2334, %v2228
          %v2367 = vadd.f32 %v2335, %v2231
          %v2368 = vadd.f32 %v2336, %v2236
          %v2369 = vadd.f32 %v2337, %v2239
          %v2370 = vadd.f32 %v2338, %v2244
          %v2371 = vadd.f32 %v2339, %v2247
          %v2372 = vadd.f32 %v2340, %v2252
          %v2373 = vadd.f32 %v2341, %v2255
          %v2374 = vadd.f32 %v2342, %v2260
          %v2375 = vadd.f32 %v2343, %v2263
          %v2376 = vadd.f32 %v2344, %v2268
          %v2377 = vadd.f32 %v2345, %v2271
          %2378 = vst [vmem:[#allocation4] sm:$0xff] %v2346
          %2379 = vst [vmem:[#allocation4 + $0x8] sm:$0xff] %v2347
          %2380 = vst [vmem:[#allocation4 + $0x10] sm:$0xff] %v2348
          %2381 = vst [vmem:[#allocation4 + $0x18] sm:$0xff] %v2349
          %2382 = vst [vmem:[#allocation4 + $0x20] sm:$0xff] %v2350
          %2383 = vst [vmem:[#allocation4 + $0x28] sm:$0xff] %v2351
          %2384 = vst [vmem:[#allocation4 + $0x30] sm:$0xff] %v2352
          %2385 = vst [vmem:[#allocation4 + $0x38] sm:$0xff] %v2353
          %2386 = vst [vmem:[#allocation4 + $0x40] sm:$0xff] %v2354
          %2387 = vst [vmem:[#allocation4 + $0x48] sm:$0xff] %v2355
          %2388 = vst [vmem:[#allocation4 + $0x50] sm:$0xff] %v2356
          %2389 = vst [vmem:[#allocation4 + $0x58] sm:$0xff] %v2357
          %2390 = vst [vmem:[#allocation4 + $0x60] sm:$0xff] %v2358
          %2391 = vst [vmem:[#allocation4 + $0x68] sm:$0xff] %v2359
          %2392 = vst [vmem:[#allocation4 + $0x70] sm:$0xff] %v2360
          %2393 = vst [vmem:[#allocation4 + $0x78] sm:$0xff] %v2361
          %2394 = vst [vmem:[#allocation4 + $0x80] sm:$0xff] %v2362
          %2395 = vst [vmem:[#allocation4 + $0x88] sm:$0xff] %v2363
          %2396 = vst [vmem:[#allocation4 + $0x90] sm:$0xff] %v2364
          %2397 = vst [vmem:[#allocation4 + $0x98] sm:$0xff] %v2365
          %2398 = vst [vmem:[#allocation4 + $0xa0] sm:$0xff] %v2366
          %2399 = vst [vmem:[#allocation4 + $0xa8] sm:$0xff] %v2367
          %2400 = vst [vmem:[#allocation4 + $0xb0] sm:$0xff] %v2368
          %2401 = vst [vmem:[#allocation4 + $0xb8] sm:$0xff] %v2369
          %2402 = vst [vmem:[#allocation4 + $0xc0] sm:$0xff] %v2370
          %2403 = vst [vmem:[#allocation4 + $0xc8] sm:$0xff] %v2371
          %2404 = vst [vmem:[#allocation4 + $0xd0] sm:$0xff] %v2372
          %2405 = vst [vmem:[#allocation4 + $0xd8] sm:$0xff] %v2373
          %2406 = vst [vmem:[#allocation4 + $0xe0] sm:$0xff] %v2374
          %2407 = vst [vmem:[#allocation4 + $0xe8] sm:$0xff] %v2375
          %2408 = vst [vmem:[#allocation4 + $0xf0] sm:$0xff] %v2376
          %2409 = vst [vmem:[#allocation4 + $0xf8] sm:$0xff] %v2377
        $region72: #{tpu_custom_call.1} parent=39 // pred_fallthru
          _
        // Predicated region
        $region73: #{tpu_custom_call.1} parent=39 // pred_check
          %p2410 = pneg %p2274
        $region74: #{tpu_custom_call.1} parent=39 // pred_check_branch
          %2412 = sbr.rel (%p2410) target = $region76
        $region75: #{tpu_custom_call.1} parent=39 // pred_region
          %v2413 = vld [vmem:[#allocation4] sm:$0xff]
          %v2414 = vld [vmem:[#allocation4 + $0x8] sm:$0xff]
          %v2415 = vld [vmem:[#allocation4 + $0x10] sm:$0xff]
          %v2416 = vld [vmem:[#allocation4 + $0x18] sm:$0xff]
          %v2417 = vld [vmem:[#allocation4 + $0x20] sm:$0xff]
          %v2418 = vld [vmem:[#allocation4 + $0x28] sm:$0xff]
          %v2419 = vld [vmem:[#allocation4 + $0x30] sm:$0xff]
          %v2420 = vld [vmem:[#allocation4 + $0x38] sm:$0xff]
          %v2421 = vld [vmem:[#allocation4 + $0x40] sm:$0xff]
          %v2422 = vld [vmem:[#allocation4 + $0x48] sm:$0xff]
          %v2423 = vld [vmem:[#allocation4 + $0x50] sm:$0xff]
          %v2424 = vld [vmem:[#allocation4 + $0x58] sm:$0xff]
          %v2425 = vld [vmem:[#allocation4 + $0x60] sm:$0xff]
          %v2426 = vld [vmem:[#allocation4 + $0x68] sm:$0xff]
          %v2427 = vld [vmem:[#allocation4 + $0x70] sm:$0xff]
          %v2428 = vld [vmem:[#allocation4 + $0x78] sm:$0xff]
          %v2429 = vld [vmem:[#allocation4 + $0x80] sm:$0xff]
          %v2430 = vld [vmem:[#allocation4 + $0x88] sm:$0xff]
          %v2431 = vld [vmem:[#allocation4 + $0x90] sm:$0xff]
          %v2432 = vld [vmem:[#allocation4 + $0x98] sm:$0xff]
          %v2433 = vld [vmem:[#allocation4 + $0xa0] sm:$0xff]
          %v2434 = vld [vmem:[#allocation4 + $0xa8] sm:$0xff]
          %v2435 = vld [vmem:[#allocation4 + $0xb0] sm:$0xff]
          %v2436 = vld [vmem:[#allocation4 + $0xb8] sm:$0xff]
          %v2437 = vld [vmem:[#allocation4 + $0xc0] sm:$0xff]
          %v2438 = vld [vmem:[#allocation4 + $0xc8] sm:$0xff]
          %v2439 = vld [vmem:[#allocation4 + $0xd0] sm:$0xff]
          %v2440 = vld [vmem:[#allocation4 + $0xd8] sm:$0xff]
          %v2441 = vld [vmem:[#allocation4 + $0xe0] sm:$0xff]
          %v2442 = vld [vmem:[#allocation4 + $0xe8] sm:$0xff]
          %v2443 = vld [vmem:[#allocation4 + $0xf0] sm:$0xff]
          %v2444 = vld [vmem:[#allocation4 + $0xf8] sm:$0xff]
          %v2445 = vmax.f32 %v2413, 0.0
          %v2446 = vmax.f32 %v2414, 0.0
          %v2447 = vmax.f32 %v2415, 0.0
          %v2448 = vmax.f32 %v2416, 0.0
          %v2449 = vmax.f32 %v2417, 0.0
          %v2450 = vmax.f32 %v2418, 0.0
          %v2451 = vmax.f32 %v2419, 0.0
          %v2452 = vmax.f32 %v2420, 0.0
          %v2453 = vmax.f32 %v2421, 0.0
          %v2454 = vmax.f32 %v2422, 0.0
          %v2455 = vmax.f32 %v2423, 0.0
          %v2456 = vmax.f32 %v2424, 0.0
          %v2457 = vmax.f32 %v2425, 0.0
          %v2458 = vmax.f32 %v2426, 0.0
          %v2459 = vmax.f32 %v2427, 0.0
          %v2460 = vmax.f32 %v2428, 0.0
          %v2461 = vmax.f32 %v2429, 0.0
          %v2462 = vmax.f32 %v2430, 0.0
          %v2463 = vmax.f32 %v2431, 0.0
          %v2464 = vmax.f32 %v2432, 0.0
          %v2465 = vmax.f32 %v2433, 0.0
          %v2466 = vmax.f32 %v2434, 0.0
          %v2467 = vmax.f32 %v2435, 0.0
          %v2468 = vmax.f32 %v2436, 0.0
          %v2469 = vmax.f32 %v2437, 0.0
          %v2470 = vmax.f32 %v2438, 0.0
          %v2471 = vmax.f32 %v2439, 0.0
          %v2472 = vmax.f32 %v2440, 0.0
          %v2473 = vmax.f32 %v2441, 0.0
          %v2474 = vmax.f32 %v2442, 0.0
          %v2475 = vmax.f32 %v2443, 0.0
          %v2476 = vmax.f32 %v2444, 0.0
          %v2477 = vpack.c.bf16 %v2446, %v2445
          %v2478 = vpack.c.bf16 %v2448, %v2447
          %v2479 = vpack.c.bf16 %v2450, %v2449
          %v2480 = vpack.c.bf16 %v2452, %v2451
          %v2481 = vpack.c.bf16 %v2454, %v2453
          %v2482 = vpack.c.bf16 %v2456, %v2455
          %v2483 = vpack.c.bf16 %v2458, %v2457
          %v2484 = vpack.c.bf16 %v2460, %v2459
          %v2485 = vpack.c.bf16 %v2462, %v2461
          %v2486 = vpack.c.bf16 %v2464, %v2463
          %v2487 = vpack.c.bf16 %v2466, %v2465
          %v2488 = vpack.c.bf16 %v2468, %v2467
          %v2489 = vpack.c.bf16 %v2470, %v2469
          %v2490 = vpack.c.bf16 %v2472, %v2471
          %v2491 = vpack.c.bf16 %v2474, %v2473
          %v2492 = vpack.c.bf16 %v2476, %v2475
          %p2493 = scmp.lt.s32.totalorder %s31, 1
          // Predicated region
          $region77: #{tpu_custom_call.1} parent=75 // pred_check
            %p2494 = pneg %p2493
          $region78: #{tpu_custom_call.1} parent=75 // pred_check_branch
            %2496 = sbr.rel (%p2494) target = $region80
          $region79: #{tpu_custom_call.1} parent=75 // pred_region
            %s2497 = smul.u32 %s32, 256
            %s2498 = sshra.s32 %s2497, 4
            %s2499 = sand.u32 %s2497, 15
            %s2500 = smul.addr %s2498, 8
            %s2501 = scalar_lea.vmem [#allocation2], %s2500
            %2502 = vst [vmem:[%s2501] sm:$0xff] %v2477
            %2503 = vst [vmem:[%s2501 + $0x8] sm:$0xff] %v2478
            %2504 = vst [vmem:[%s2501 + $0x10] sm:$0xff] %v2479
            %2505 = vst [vmem:[%s2501 + $0x18] sm:$0xff] %v2480
            %2506 = vst [vmem:[%s2501 + $0x20] sm:$0xff] %v2481
            %2507 = vst [vmem:[%s2501 + $0x28] sm:$0xff] %v2482
            %2508 = vst [vmem:[%s2501 + $0x30] sm:$0xff] %v2483
            %2509 = vst [vmem:[%s2501 + $0x38] sm:$0xff] %v2484
            %2510 = vst [vmem:[%s2501 + $0x40] sm:$0xff] %v2485
            %2511 = vst [vmem:[%s2501 + $0x48] sm:$0xff] %v2486
            %2512 = vst [vmem:[%s2501 + $0x50] sm:$0xff] %v2487
            %2513 = vst [vmem:[%s2501 + $0x58] sm:$0xff] %v2488
            %2514 = vst [vmem:[%s2501 + $0x60] sm:$0xff] %v2489
            %2515 = vst [vmem:[%s2501 + $0x68] sm:$0xff] %v2490
            %2516 = vst [vmem:[%s2501 + $0x70] sm:$0xff] %v2491
            %2517 = vst [vmem:[%s2501 + $0x78] sm:$0xff] %v2492
          $region80: #{tpu_custom_call.1} parent=75 // pred_fallthru
            _
          %p2518 = scmp.eq.s32.totalorder %s31, 1
          // Predicated region
          $region81: #{tpu_custom_call.1} parent=75 // pred_check
            %p2519 = pneg %p2518
          $region82: #{tpu_custom_call.1} parent=75 // pred_check_branch
            %2521 = sbr.rel (%p2519) target = $region84
          $region83: #{tpu_custom_call.1} parent=75 // pred_region
            %v2522 = vld [vmem:[#allocation11] sm:$0xf]
            %v2523 = vld [vmem:[#allocation11 + $0x4] sm:$0xf]
            %v2524 = vld [vmem:[#allocation11 + $0x8] sm:$0xf]
            %v2525 = vld [vmem:[#allocation11 + $0xc] sm:$0xf]
            %v2526 = vld [vmem:[#allocation11 + $0x10] sm:$0xf]
            %v2527 = vld [vmem:[#allocation11 + $0x14] sm:$0xf]
            %v2528 = vld [vmem:[#allocation11 + $0x18] sm:$0xf]
            %v2529 = vld [vmem:[#allocation11 + $0x1c] sm:$0xf]
            %v2530 = vld [vmem:[#allocation11 + $0x20] sm:$0xf]
            %v2531 = vld [vmem:[#allocation11 + $0x24] sm:$0xf]
            %v2532 = vld [vmem:[#allocation11 + $0x28] sm:$0xf]
            %v2533 = vld [vmem:[#allocation11 + $0x2c] sm:$0xf]
            %v2534 = vld [vmem:[#allocation11 + $0x30] sm:$0xf]
            %v2535 = vld [vmem:[#allocation11 + $0x34] sm:$0xf]
            %v2536 = vld [vmem:[#allocation11 + $0x38] sm:$0xf]
            %v2537 = vld [vmem:[#allocation11 + $0x3c] sm:$0xf]
            %v2538 = vld [vmem:[%s4] sm:$0x1]
            %v2540 = vlaneseq
            %v2541 = vshrl.u32 %v2540, 7
            %v2542 = vsub.s32 0, %v2541
            %v2543 = vrot.slane %v2538, %v2542
            %v2561 = vunpack.c.l.b16 %v2522
            %v2562 = vunpack.c.l.b16 %v2523
            %v2563 = vunpack.c.l.b16 %v2524
            %v2564 = vunpack.c.l.b16 %v2525
            %v2565 = vunpack.c.l.b16 %v2526
            %v2566 = vunpack.c.l.b16 %v2527
            %v2567 = vunpack.c.l.b16 %v2528
            %v2568 = vunpack.c.l.b16 %v2529
            %v2569 = vunpack.c.l.b16 %v2530
            %v2570 = vunpack.c.l.b16 %v2531
            %v2571 = vunpack.c.l.b16 %v2532
            %v2572 = vunpack.c.l.b16 %v2533
            %v2573 = vunpack.c.l.b16 %v2534
            %v2574 = vunpack.c.l.b16 %v2535
            %v2575 = vunpack.c.l.b16 %v2536
            %v2576 = vunpack.c.l.b16 %v2537
            %v2577 = vpack.c.b16 %v2562, %v2561
            %v2578 = vpack.c.b16 %v2564, %v2563
            %v2579 = vpack.c.b16 %v2566, %v2565
            %v2580 = vpack.c.b16 %v2568, %v2567
            %v2581 = vpack.c.b16 %v2570, %v2569
            %v2582 = vpack.c.b16 %v2572, %v2571
            %v2583 = vpack.c.b16 %v2574, %v2573
            %v2584 = vpack.c.b16 %v2576, %v2575
            %2593 = vmatprep.subr.bf16.mxu0 0
            %2594 = vmatpush1.bf16.msra.mxu0 %v2577
            %2595 = vmatprep.subr.bf16.mxu0 0
            %2596 = vmatpush1.bf16.msra.mxu0 %v2578
            %2597 = vmatprep.subr.bf16.mxu0 0
            %2598 = vmatpush1.bf16.msra.mxu0 %v2579
            %2599 = vmatprep.subr.bf16.mxu0 0
            %2600 = vmatpush1.bf16.msra.mxu0 %v2580
            %2601 = vmatprep.subr.bf16.mxu0 0
            %2602 = vmatpush1.bf16.msra.mxu0 %v2581
            %2603 = vmatprep.subr.bf16.mxu0 0
            %2604 = vmatpush1.bf16.msra.mxu0 %v2582
            %2605 = vmatprep.subr.bf16.mxu0 0
            %2606 = vmatpush1.bf16.msra.mxu0 %v2583
            %2607 = vmatprep.subr.bf16.mxu0 0
            %2608 = vmatpush1.bf16.msra.mxu0 %v2584
            %2609 = vmatprep.subr.bf16.mxu0 0
            %2610 = vmatpush1.bf16.msra.mxu0 0
            %2611 = vmatprep.subr.bf16.mxu0 0
            %2612 = vmatpush1.bf16.msra.mxu0 0
            %2613 = vmatprep.subr.bf16.mxu0 0
            %2614 = vmatpush1.bf16.msra.mxu0 0
            %2615 = vmatprep.subr.bf16.mxu0 0
            %2616 = vmatpush1.bf16.msra.mxu0 0
            %2617 = vmatprep.subr.bf16.mxu0 0
            %2618 = vmatpush1.bf16.msra.mxu0 0
            %2619 = vmatprep.subr.bf16.mxu0 0
            %2620 = vmatpush1.bf16.msra.mxu0 0
            %2621 = vmatprep.subr.bf16.mxu0 0
            %2622 = vmatpush1.bf16.msra.mxu0 0
            %2623 = vmatprep.subr.bf16.mxu0 0
            %2624 = vmatpush1.bf16.msra.mxu0 0
            %2625 = vmatprep.mubr.bf16.mxu0 0
            %2626 = vmatmul.mubr.bf16.gmra.mrb[0].mxu0 %v2477
            %v2627 = vpop.f32.mrb[0].mxu0
            %v2628 = vadd.f32 %v2543, %v2627
            %v2629 = vpop.f32.mrb[0].mxu0
            %v2630 = vpop.f32.mrb[0].mxu0
            %v2631 = vadd.f32 %v2543, %v2630
            %v2632 = vpop.f32.mrb[0].mxu0
            %2633 = vmatprep.mubr.bf16.mxu0 0
            %2634 = vmatmul.mubr.bf16.gmra.mrb[0].mxu0 %v2478
            %v2635 = vpop.f32.mrb[0].mxu0
            %v2636 = vadd.f32 %v2543, %v2635
            %v2637 = vpop.f32.mrb[0].mxu0
            %v2638 = vpop.f32.mrb[0].mxu0
            %v2639 = vadd.f32 %v2543, %v2638
            %v2640 = vpop.f32.mrb[0].mxu0
            %2641 = vmatprep.mubr.bf16.mxu0 0
            %2642 = vmatmul.mubr.bf16.gmra.mrb[0].mxu0 %v2479
            %v2643 = vpop.f32.mrb[0].mxu0
            %v2644 = vadd.f32 %v2543, %v2643
            %v2645 = vpop.f32.mrb[0].mxu0
            %v2646 = vpop.f32.mrb[0].mxu0
            %v2647 = vadd.f32 %v2543, %v2646
            %v2648 = vpop.f32.mrb[0].mxu0
            %2649 = vmatprep.mubr.bf16.mxu0 0
            %2650 = vmatmul.mubr.bf16.gmra.mrb[0].mxu0 %v2480
            %v2651 = vpop.f32.mrb[0].mxu0
            %v2652 = vadd.f32 %v2543, %v2651
            %v2653 = vpop.f32.mrb[0].mxu0
            %v2654 = vpop.f32.mrb[0].mxu0
            %v2655 = vadd.f32 %v2543, %v2654
            %v2656 = vpop.f32.mrb[0].mxu0
            %2657 = vmatprep.mubr.bf16.mxu0 0
            %2658 = vmatmul.mubr.bf16.gmra.mrb[0].mxu0 %v2481
            %v2659 = vpop.f32.mrb[0].mxu0
            %v2660 = vadd.f32 %v2543, %v2659
            %v2661 = vpop.f32.mrb[0].mxu0
            %v2662 = vpop.f32.mrb[0].mxu0
            %v2663 = vadd.f32 %v2543, %v2662
            %v2664 = vpop.f32.mrb[0].mxu0
            %2665 = vmatprep.mubr.bf16.mxu0 0
            %2666 = vmatmul.mubr.bf16.gmra.mrb[0].mxu0 %v2482
            %v2667 = vpop.f32.mrb[0].mxu0
            %v2668 = vadd.f32 %v2543, %v2667
            %v2669 = vpop.f32.mrb[0].mxu0
            %v2670 = vpop.f32.mrb[0].mxu0
            %v2671 = vadd.f32 %v2543, %v2670
            %v2672 = vpop.f32.mrb[0].mxu0
            %2673 = vmatprep.mubr.bf16.mxu0 0
            %2674 = vmatmul.mubr.bf16.gmra.mrb[0].mxu0 %v2483
            %v2675 = vpop.f32.mrb[0].mxu0
            %v2676 = vadd.f32 %v2543, %v2675
            %v2677 = vpop.f32.mrb[0].mxu0
            %v2678 = vpop.f32.mrb[0].mxu0
            %v2679 = vadd.f32 %v2543, %v2678
            %v2680 = vpop.f32.mrb[0].mxu0
            %2681 = vmatprep.mubr.bf16.mxu0 0
            %2682 = vmatmul.mubr.bf16.gmra.mrb[0].mxu0 %v2484
            %v2683 = vpop.f32.mrb[0].mxu0
            %v2684 = vadd.f32 %v2543, %v2683
            %v2685 = vpop.f32.mrb[0].mxu0
            %v2686 = vpop.f32.mrb[0].mxu0
            %v2687 = vadd.f32 %v2543, %v2686
            %v2688 = vpop.f32.mrb[0].mxu0
            %2689 = vmatprep.mubr.bf16.mxu0 0
            %2690 = vmatmul.mubr.bf16.gmra.mrb[0].mxu0 %v2485
            %v2691 = vpop.f32.mrb[0].mxu0
            %v2692 = vadd.f32 %v2543, %v2691
            %v2693 = vpop.f32.mrb[0].mxu0
            %v2694 = vpop.f32.mrb[0].mxu0
            %v2695 = vadd.f32 %v2543, %v2694
            %v2696 = vpop.f32.mrb[0].mxu0
            %2697 = vmatprep.mubr.bf16.mxu0 0
            %2698 = vmatmul.mubr.bf16.gmra.mrb[0].mxu0 %v2486
            %v2699 = vpop.f32.mrb[0].mxu0
            %v2700 = vadd.f32 %v2543, %v2699
            %v2701 = vpop.f32.mrb[0].mxu0
            %v2702 = vpop.f32.mrb[0].mxu0
            %v2703 = vadd.f32 %v2543, %v2702
            %v2704 = vpop.f32.mrb[0].mxu0
            %2705 = vmatprep.mubr.bf16.mxu0 0
            %2706 = vmatmul.mubr.bf16.gmra.mrb[0].mxu0 %v2487
            %v2707 = vpop.f32.mrb[0].mxu0
            %v2708 = vadd.f32 %v2543, %v2707
            %v2709 = vpop.f32.mrb[0].mxu0
            %v2710 = vpop.f32.mrb[0].mxu0
            %v2711 = vadd.f32 %v2543, %v2710
            %v2712 = vpop.f32.mrb[0].mxu0
            %2713 = vmatprep.mubr.bf16.mxu0 0
            %2714 = vmatmul.mubr.bf16.gmra.mrb[0].mxu0 %v2488
            %v2715 = vpop.f32.mrb[0].mxu0
            %v2716 = vadd.f32 %v2543, %v2715
            %v2717 = vpop.f32.mrb[0].mxu0
            %v2718 = vpop.f32.mrb[0].mxu0
            %v2719 = vadd.f32 %v2543, %v2718
            %v2720 = vpop.f32.mrb[0].mxu0
            %2721 = vmatprep.mubr.bf16.mxu0 0
            %2722 = vmatmul.mubr.bf16.gmra.mrb[0].mxu0 %v2489
            %v2723 = vpop.f32.mrb[0].mxu0
            %v2724 = vadd.f32 %v2543, %v2723
            %v2725 = vpop.f32.mrb[0].mxu0
            %v2726 = vpop.f32.mrb[0].mxu0
            %v2727 = vadd.f32 %v2543, %v2726
            %v2728 = vpop.f32.mrb[0].mxu0
            %2729 = vmatprep.mubr.bf16.mxu0 0
            %2730 = vmatmul.mubr.bf16.gmra.mrb[0].mxu0 %v2490
            %v2731 = vpop.f32.mrb[0].mxu0
            %v2732 = vadd.f32 %v2543, %v2731
            %v2733 = vpop.f32.mrb[0].mxu0
            %v2734 = vpop.f32.mrb[0].mxu0
            %v2735 = vadd.f32 %v2543, %v2734
            %v2736 = vpop.f32.mrb[0].mxu0
            %2737 = vmatprep.mubr.bf16.mxu0 0
            %2738 = vmatmul.mubr.bf16.gmra.mrb[0].mxu0 %v2491
            %v2739 = vpop.f32.mrb[0].mxu0
            %v2740 = vadd.f32 %v2543, %v2739
            %v2741 = vpop.f32.mrb[0].mxu0
            %v2742 = vpop.f32.mrb[0].mxu0
            %v2743 = vadd.f32 %v2543, %v2742
            %v2744 = vpop.f32.mrb[0].mxu0
            %2745 = vmatprep.mubr.bf16.mxu0 0
            %2746 = vmatmul.mubr.bf16.gmra.mrb[0].mxu0 %v2492
            %v2747 = vpop.f32.mrb[0].mxu0
            %v2748 = vadd.f32 %v2543, %v2747
            %v2749 = vpop.f32.mrb[0].mxu0
            %v2750 = vpop.f32.mrb[0].mxu0
            %v2751 = vadd.f32 %v2543, %v2750
            %v2752 = vpop.f32.mrb[0].mxu0
            %2753 = vdwg.mxu0
            %2754 = vst [vmem:[%s377] sm:$0xff] %v2628
            %2755 = vst [vmem:[%s377 + $0x8] sm:$0xff] %v2631
            %2756 = vst [vmem:[%s377 + $0x10] sm:$0xff] %v2636
            %2757 = vst [vmem:[%s377 + $0x18] sm:$0xff] %v2639
            %2758 = vst [vmem:[%s377 + $0x20] sm:$0xff] %v2644
            %2759 = vst [vmem:[%s377 + $0x28] sm:$0xff] %v2647
            %2760 = vst [vmem:[%s377 + $0x30] sm:$0xff] %v2652
            %2761 = vst [vmem:[%s377 + $0x38] sm:$0xff] %v2655
            %2762 = vst [vmem:[%s377 + $0x40] sm:$0xff] %v2660
            %2763 = vst [vmem:[%s377 + $0x48] sm:$0xff] %v2663
            %2764 = vst [vmem:[%s377 + $0x50] sm:$0xff] %v2668
            %2765 = vst [vmem:[%s377 + $0x58] sm:$0xff] %v2671
            %2766 = vst [vmem:[%s377 + $0x60] sm:$0xff] %v2676
            %2767 = vst [vmem:[%s377 + $0x68] sm:$0xff] %v2679
            %2768 = vst [vmem:[%s377 + $0x70] sm:$0xff] %v2684
            %2769 = vst [vmem:[%s377 + $0x78] sm:$0xff] %v2687
            %2770 = vst [vmem:[%s377 + $0x80] sm:$0xff] %v2692
            %2771 = vst [vmem:[%s377 + $0x88] sm:$0xff] %v2695
            %2772 = vst [vmem:[%s377 + $0x90] sm:$0xff] %v2700
            %2773 = vst [vmem:[%s377 + $0x98] sm:$0xff] %v2703
            %2774 = vst [vmem:[%s377 + $0xa0] sm:$0xff] %v2708
            %2775 = vst [vmem:[%s377 + $0xa8] sm:$0xff] %v2711
            %2776 = vst [vmem:[%s377 + $0xb0] sm:$0xff] %v2716
            %2777 = vst [vmem:[%s377 + $0xb8] sm:$0xff] %v2719
            %2778 = vst [vmem:[%s377 + $0xc0] sm:$0xff] %v2724
            %2779 = vst [vmem:[%s377 + $0xc8] sm:$0xff] %v2727
            %2780 = vst [vmem:[%s377 + $0xd0] sm:$0xff] %v2732
            %2781 = vst [vmem:[%s377 + $0xd8] sm:$0xff] %v2735
            %2782 = vst [vmem:[%s377 + $0xe0] sm:$0xff] %v2740
            %2783 = vst [vmem:[%s377 + $0xe8] sm:$0xff] %v2743
            %2784 = vst [vmem:[%s377 + $0xf0] sm:$0xff] %v2748
            %2785 = vst [vmem:[%s377 + $0xf8] sm:$0xff] %v2751
          $region84: #{tpu_custom_call.1} parent=75 // pred_fallthru
            _
        $region76: #{tpu_custom_call.1} parent=39 // pred_fallthru
          _
        %s2786 = sand.u32 %s187, 1
        %s2787 = scalar_lea.sflag [#allocation7], %s2786
        %s2788 = sand.u32 %s187, 1
        %s2789 = smul.addr %s2788, 256
        %s2790 = scalar_lea.vmem [#allocation13], %s2789
        // Predicated region
        $region85: #{tpu_custom_call.1} parent=39 // pred_check
          %p2791 = pneg %p197
        $region86: #{tpu_custom_call.1} parent=39 // pred_check_branch
          %2793 = sbr.rel (%p2791) target = $region88
        $region87: #{tpu_custom_call.1} parent=39 // pred_region
          %s2794 = smul.u32 32, %s32
          %s2796 = ssub.s32 4096, 4096
          %2797 = vsyncadd %s2787, %s2796
          %s2798 = smul.addr %s2794, 128
          %s2799 = scalar_lea.hbm %s5, %s2798
          %s2800 = sshll.u32 %s2790, 4
          %s2801 = int_to_ptr.vmem [resolvable:$true] %s2800
          %2806 = dma.vmem_to_hbm [thread:$0]  %s2801, 4096, %s2799, %s2787, 128, 128, 8
        $region88: #{tpu_custom_call.1} parent=39 // pred_fallthru
          _
      $region40: #{tpu_custom_call.1} parent=5 // pred_fallthru
        _
      %p2807 = scmp.le.s32.totalorder 2, %s21
      // Predicated region
      $region89: #{tpu_custom_call.1} parent=5 // pred_check
        %p2808 = pneg %p2807
      $region90: #{tpu_custom_call.1} parent=5 // pred_check_branch
        %2810 = sbr.rel (%p2808) target = $region92
      $region91: #{tpu_custom_call.1} parent=5 // pred_region
        %s2811 = ssub.s32 %s21, 2
        // Predicated region
        $region93: #{tpu_custom_call.1} parent=91 // pred_check
          %p2812 = pneg %p203
        $region94: #{tpu_custom_call.1} parent=91 // pred_check_branch
          %2814 = sbr.rel (%p2812) target = $region96
        $region95: #{tpu_custom_call.1} parent=91 // pred_region
          %s2815 = sand.u32 %s188, 1
          %s2816 = scalar_lea.sflag [#allocation7], %s2815
          %s2817 = sand.u32 %s188, 1
          %s2818 = smul.addr %s2817, 256
          %s2819 = scalar_lea.vmem [#allocation13], %s2818
          %2820 = dma.done %s2816, 4096
        $region96: #{tpu_custom_call.1} parent=91 // pred_fallthru
          _
      $region92: #{tpu_custom_call.1} parent=5 // pred_fallthru
        _
    $region6: #{tpu_custom_call.1} parent=1 // loop_footer
      %s25 = sadd.s32 1, %s21
    $region7: #{tpu_custom_call.1} parent=1 // loop_footer_branch
      %20 = sbr.rel target = $region3
    $region8: #{tpu_custom_call.1} parent=1 // loop_exit
      _
    %2821 = vsyncpa [#allocation6], 1
    %s2822 = scalar_lea.sflag [#allocation6], 1
    %2823 = vsyncpa %s2822, 1
    %2824 = vsyncpa [#allocation9], 1
    %s2825 = scalar_lea.sflag [#allocation9], 1
    %2826 = vsyncpa %s2825, 1
    %2827 = vsyncpa [#allocation12], 1
    %2828 = vsyncpa [#allocation7], 1
    %s2829 = scalar_lea.sflag [#allocation7], 1
    %2830 = vsyncpa %s2829, 1

</llo_original>
